<compile_context>
chip_gen: v7x
topology: tpu7x:2x2x1
jax: 0.10.0
libtpu: 0.0.40
codegen_flags: <defaults>
</compile_context>

<pallas_src>
import functools

import jax
import jax.numpy as jnp
from jax import lax
from jax.experimental import pallas as pl
from jax.experimental.pallas import tpu as pltpu

_EPS = 1e-5
_NEG_SLOPE = 0.2
_LANE = 128


def _round_up(n, m):
    return (n + m - 1) // m * m


def _downsample_kernel(x_ref, w1_ref, w2_ref, prm_ref,
                       out_ref, out2_ref,
                       xe_scr, ye_scr,
                       *, B, L, Lp, K, P):
    R = B * Lp                       # total rows = batch folded into the matmul M dim
    Cp_in = x_ref.shape[1]           # padded input channels  (multiple of 128)
    Cp = out_ref.shape[1]            # padded output channels (multiple of 128)
    N2 = out2_ref.shape[0]           # pooled rows (stride-2 fold over the whole slab)
    RPAD = out_ref.shape[0] - R      # trailing -inf rows so pool taps never read OOB
    inv_n = 1.0 / float(B * L)       # BN normalizer (valid positions only)

    # valid-row mask computed in-kernel (no 1-lane-wide mask input / DMA)
    row = lax.broadcasted_iota(jnp.int32, (R, Cp), 0) % Lp
    vb = (row >= P) & (row < P + L)

    # packed per-channel params: rows = [b1, g1, be1, b2, g2, be2]
    b1, g1, be1 = prm_ref[0:1, :], prm_ref[1:2, :], prm_ref[2:3, :]
    b2, g2, be2 = prm_ref[3:4, :], prm_ref[4:5, :], prm_ref[5:6, :]

    def bn_lrelu(h, g, be):
        # training-mode BatchNorm1d (biased batch stats over valid rows) + LeakyReLU(0.2)
        hv = jnp.where(vb, h, 0.0)
        mu = jnp.sum(hv, axis=0, keepdims=True) * inv_n
        d = jnp.where(vb, h - mu, 0.0)
        var = jnp.sum(d * d, axis=0, keepdims=True) * inv_n
        z = (h - mu) * (g * lax.rsqrt(var + _EPS)) + be
        return jnp.where(z >= 0, z, _NEG_SLOPE * z)

    # ---------------- Conv block 1: one deep matmul, im2col built in registers ------
    # Extended slab (P margin rows top & bottom) so tap k is a plain row-shifted load.
    # Margin values only matter for discarded pad output rows; zeroed for hygiene.
    xe_scr[pl.ds(0, P), :] = jnp.zeros((P, Cp_in), xe_scr.dtype)
    xe_scr[pl.ds(P + R, P), :] = jnp.zeros((P, Cp_in), xe_scr.dtype)
    xe_scr[pl.ds(P, R), :] = x_ref[...]                     # bf16, lane-dense store
    a1 = jnp.concatenate([xe_scr[pl.ds(k, R), :] for k in range(K)], axis=1)
    h1 = jnp.dot(a1, w1_ref[...], preferred_element_type=jnp.float32) + b1
    y1 = bn_lrelu(h1, g1, be1)                               # (R, Cp) f32

    # ---------------- Conv block 2 (same scheme) ----------------
    ye_scr[pl.ds(0, P), :] = jnp.zeros((P, Cp), ye_scr.dtype)
    ye_scr[pl.ds(P + R, P), :] = jnp.zeros((P, Cp), ye_scr.dtype)
    ye_scr[pl.ds(P, R), :] = jnp.where(vb, y1, 0.0).astype(ye_scr.dtype)
    a2 = jnp.concatenate([ye_scr[pl.ds(k, R), :] for k in range(K)], axis=1)
    h2 = jnp.dot(a2, w2_ref[...], preferred_element_type=jnp.float32) + b2
    y2 = bn_lrelu(h2, g2, be2)                               # (R, Cp) f32

    # Residual-path output: single lane-dense slab store.  Pad rows (-inf, discarded
    # by the wrapper) make the same buffer the -inf-padded MaxPool input; every pool
    # window contains >=1 valid value, so no all--inf windows reach valid outputs.
    out_ref[pl.ds(0, R), :] = jnp.where(vb, y2, -jnp.inf)
    out_ref[pl.ds(R, RPAD), :] = jnp.full((RPAD, Cp), -jnp.inf, out_ref.dtype)

    # -------- MaxPool1d(kernel=5, stride=2, padding=2), batches folded --------------
    # Per-batch length Lp is even, so all window bases share parity: 5 stride-2 loads
    # over the whole slab, running max, one lane-dense out2 store.  Rows beyond each
    # batch's L_out valid outputs are discarded in the wrapper.
    m = out_ref[pl.ds(P - 2, N2, stride=2), :]
    for t in range(1, 5):
        m = jnp.maximum(m, out_ref[pl.ds(P - 2 + t, N2, stride=2), :])
    out2_ref[...] = m


def downsample_layer_t(x, params):
    """Pallas implementation of DownsampleLayer_T.forward. Returns (out, out_2)."""
    w1, b1, g1, be1, w2, b2, g2, be2 = params
    B, Cin, L = x.shape
    Cout, _, K = w1.shape
    P = K // 2                                   # = 3
    extra = L % 2                                # keep per-batch length even (pool fold)
    Lp = L + 2 * P + extra                       # per-batch padded length (even)
    R = B * Lp                                   # total rows
    L_out = (L - 1) // 2 + 1                     # MaxPool1d(k=5, s=2, p=2)
    Cp_in = _round_up(Cin, _LANE)                # lane-dense channel padding
    Cp = _round_up(Cout, _LANE)
    RPAD = 8                                     # trailing -inf rows for pool taps
    N2 = B * (Lp // 2)
    assert P - 2 >= 0 and (P + 2 + 2 * (N2 - 1)) < R + RPAD  # pool taps stay in-bounds

    # ---- layout glue (plain JAX): channels-last + per-batch zero pads + channel pad
    #      in ONE pad; batch folded into rows; bf16 so HBM->VMEM traffic is halved.
    x_slab = jnp.pad(jnp.transpose(x, (0, 2, 1)).astype(jnp.bfloat16),
                     ((0, 0), (P, P + extra), (0, Cp_in - Cin))).reshape(R, Cp_in)

    # weights as (K*Cp_in, Cp) so  im2col @ W  == Conv1d (bf16 for the MXU)
    w1_f = jnp.pad(jnp.transpose(w1, (2, 1, 0)),
                   ((0, 0), (0, Cp_in - Cin), (0, Cp - Cout))
                   ).reshape(K * Cp_in, Cp).astype(jnp.bfloat16)
    w2_f = jnp.pad(jnp.transpose(w2, (2, 1, 0)),
                   ((0, 0), (0, Cp - Cout), (0, Cp - Cout))
                   ).reshape(K * Cp, Cp).astype(jnp.bfloat16)

    # all per-channel params packed into a single small input (rows b1,g1,be1,b2,g2,be2)
    prm = jnp.pad(jnp.stack([b1, g1, be1, b2, g2, be2], axis=0),
                  ((0, 0), (0, Cp - Cout))).astype(jnp.float32)

    flops = 2 * R * K * (Cp_in + Cp) * Cp
    bytes_accessed = (x_slab.size * 2 + w1_f.size * 2 + w2_f.size * 2 + prm.size * 4
                      + (R + RPAD) * Cp * 4 + N2 * Cp * 4)

    kern = functools.partial(_downsample_kernel, B=B, L=L, Lp=Lp, K=K, P=P)
    vmem = pl.BlockSpec(memory_space=pltpu.MemorySpace.VMEM)
    out_slab, out2_slab = pl.pallas_call(
        kern,
        out_shape=(jax.ShapeDtypeStruct((R + RPAD, Cp), jnp.float32),
                   jax.ShapeDtypeStruct((N2, Cp), jnp.float32)),
        in_specs=[vmem] * 4,
        out_specs=(vmem, vmem),
        scratch_shapes=[
            pltpu.VMEM((R + 2 * P, Cp_in), jnp.bfloat16),   # x  with margin rows
            pltpu.VMEM((R + 2 * P, Cp), jnp.bfloat16),      # y1 with margin rows
        ],
        compiler_params=pltpu.CompilerParams(vmem_limit_bytes=32 * 1024 * 1024),
        cost_estimate=pl.CostEstimate(flops=flops, transcendentals=0,
                                      bytes_accessed=bytes_accessed),
    )(x_slab, w1_f, w2_f, prm)

    # layout glue back to PyTorch's NCW (drop pad rows / padded channels)
    out = out_slab[:R].reshape(B, Lp, Cp)[:, P:P + L, :Cout].transpose(0, 2, 1)
    out_2 = out2_slab.reshape(B, Lp // 2, Cp)[:, :L_out, :Cout].transpose(0, 2, 1)
    return out, out_2


def _reference(x, params):
    """Pure-JAX reference matching the PyTorch forward (training-mode BN)."""
    w1, b1, g1, be1, w2, b2, g2, be2 = params

    def conv(y, w, b):
        z = lax.conv_general_dilated(y, w, (1,), [(3, 3)],
                                     dimension_numbers=('NCH', 'OIH', 'NCH'))
        return z + b[None, :, None]

    def bn_lrelu(y, g, be):
        mu = y.mean(axis=(0, 2), keepdims=True)
        var = ((y - mu) ** 2).mean(axis=(0, 2), keepdims=True)
        z = g[None, :, None] * (y - mu) / jnp.sqrt(var + _EPS) + be[None, :, None]
        return jnp.where(z >= 0, z, _NEG_SLOPE * z)

    out = bn_lrelu(conv(x, w1, b1), g1, be1)
    out = bn_lrelu(conv(out, w2, b2), g2, be2)
    out2 = lax.reduce_window(out, -jnp.inf, lax.max,
                             (1, 1, 5), (1, 1, 2),
                             [(0, 0), (0, 0), (2, 2)])
    return out, out2


if __name__ == "__main__":
    B, Cin, Cout, L = 2, 4, 8, 16
    key = jax.random.PRNGKey(0)
    ks = jax.random.split(key, 9)
    x = jax.random.normal(ks[0], (B, Cin, L), jnp.float32)
    params = (
        0.2 * jax.random.normal(ks[1], (Cout, Cin, 7), jnp.float32),   # conv1 weight
        0.1 * jax.random.normal(ks[2], (Cout,), jnp.float32),          # conv1 bias
        1.0 + 0.1 * jax.random.normal(ks[3], (Cout,), jnp.float32),    # bn1 gamma
        0.1 * jax.random.normal(ks[4], (Cout,), jnp.float32),          # bn1 beta
        0.2 * jax.random.normal(ks[5], (Cout, Cout, 7), jnp.float32),  # conv2 weight
        0.1 * jax.random.normal(ks[6], (Cout,), jnp.float32),          # conv2 bias
        1.0 + 0.1 * jax.random.normal(ks[7], (Cout,), jnp.float32),    # bn2 gamma
        0.1 * jax.random.normal(ks[8], (Cout,), jnp.float32),          # bn2 beta
    )

    out, out2 = downsample_layer_t(x, params)
    jax.block_until_ready((out, out2))

    ref_out, ref_out2 = _reference(x, params)
    assert out.shape == (B, Cout, L)
    assert out2.shape == (B, Cout, (L - 1) // 2 + 1)
    # bf16 MXU inputs with f32 accumulation -> slightly looser tolerance than pure f32
    assert jnp.allclose(out, ref_out, atol=5e-2, rtol=5e-2)
    assert jnp.allclose(out2, ref_out2, atol=5e-2, rtol=5e-2)
    print("KERNEL_OK")
</pallas_src>

<mosaic_0001>
module attributes {stable_mosaic.version = 11 : i64} {
  func.func @_downsample_kernel(%arg0: memref<44x128xbf16, #tpu.memory_space<vmem>>, %arg1: memref<896x128xbf16, #tpu.memory_space<vmem>>, %arg2: memref<896x128xbf16, #tpu.memory_space<vmem>>, %arg3: memref<6x128xf32, #tpu.memory_space<vmem>>, %arg4: memref<52x128xf32, #tpu.memory_space<vmem>>, %arg5: memref<22x128xf32, #tpu.memory_space<vmem>>, %arg6: memref<50x128xbf16, #tpu.memory_space<vmem>>, %arg7: memref<50x128xbf16, #tpu.memory_space<vmem>>) attributes {dimension_semantics = [], scalar_prefetch = 0 : i64, scratch_operands = 2 : i64, tpu.core_type = #tpu.core_type<tc>} {
    %0 = tpu.iota {dimensions = array<i32: 0>} : vector<44x128xi32>
    %c22_i32 = arith.constant 22 : i32
    %c0_i32 = arith.constant 0 : i32
    %1 = arith.cmpi eq, %c22_i32, %c0_i32 : i32
    %c1_i32 = arith.constant 1 : i32
    %2 = arith.select %1, %c1_i32, %c22_i32 : i32
    %3 = vector.broadcast %2 : i32 to vector<44x128xi32>
    %4 = arith.remsi %0, %3 : vector<44x128xi32>
    %c0_i32_0 = arith.constant 0 : i32
    %5 = vector.broadcast %c0_i32_0 : i32 to vector<44x128xi32>
    %6 = arith.cmpi ne, %4, %5 : vector<44x128xi32>
    %c0_i32_1 = arith.constant 0 : i32
    %7 = vector.broadcast %c0_i32_1 : i32 to vector<44x128xi32>
    %8 = arith.cmpi slt, %4, %7 : vector<44x128xi32>
    %c0_i32_2 = arith.constant 0 : i32
    %9 = arith.cmpi slt, %2, %c0_i32_2 : i32
    %10 = vector.broadcast %9 : i1 to vector<44x128xi1>
    %11 = vector.broadcast %10 : vector<44x128xi1> to vector<44x128xi1>
    %12 = arith.xori %8, %11 : vector<44x128xi1>
    %13 = arith.andi %12, %6 : vector<44x128xi1>
    %14 = vector.broadcast %2 : i32 to vector<44x128xi32>
    %15 = arith.addi %4, %14 : vector<44x128xi32>
    %16 = arith.select %13, %15, %4 : vector<44x128xi1>, vector<44x128xi32>
    %c3_i32 = arith.constant 3 : i32
    %17 = vector.broadcast %c3_i32 : i32 to vector<44x128xi32>
    %18 = arith.cmpi sge, %16, %17 : vector<44x128xi32>
    %c19_i32 = arith.constant 19 : i32
    %19 = vector.broadcast %c19_i32 : i32 to vector<44x128xi32>
    %20 = arith.cmpi slt, %16, %19 : vector<44x128xi32>
    %21 = arith.andi %18, %20 : vector<44x128xi1>
    %c0 = arith.constant 0 : index
    %c0_3 = arith.constant 0 : index
    %22 = vector.load %arg3[%c0, %c0_3] : memref<6x128xf32, #tpu.memory_space<vmem>>, vector<1x128xf32>
    %c1 = arith.constant 1 : index
    %c0_4 = arith.constant 0 : index
    %23 = vector.load %arg3[%c1, %c0_4] : memref<6x128xf32, #tpu.memory_space<vmem>>, vector<1x128xf32>
    %c2 = arith.constant 2 : index
    %c0_5 = arith.constant 0 : index
    %24 = vector.load %arg3[%c2, %c0_5] : memref<6x128xf32, #tpu.memory_space<vmem>>, vector<1x128xf32>
    %c3 = arith.constant 3 : index
    %c0_6 = arith.constant 0 : index
    %25 = vector.load %arg3[%c3, %c0_6] : memref<6x128xf32, #tpu.memory_space<vmem>>, vector<1x128xf32>
    %c4 = arith.constant 4 : index
    %c0_7 = arith.constant 0 : index
    %26 = vector.load %arg3[%c4, %c0_7] : memref<6x128xf32, #tpu.memory_space<vmem>>, vector<1x128xf32>
    %c5 = arith.constant 5 : index
    %c0_8 = arith.constant 0 : index
    %27 = vector.load %arg3[%c5, %c0_8] : memref<6x128xf32, #tpu.memory_space<vmem>>, vector<1x128xf32>
    %cst = arith.constant 0.000000e+00 : bf16
    %28 = vector.broadcast %cst : bf16 to vector<3x128xbf16>
    %c0_9 = arith.constant 0 : index
    %c0_10 = arith.constant 0 : index
    %29 = vector.load %arg6[%c0_9, %c0_10] : memref<50x128xbf16, #tpu.memory_space<vmem>>, vector<3x128xbf16>
    tpu.vector_store %arg6[%c0_9, %c0_10], %28 {strides = array<i32>} : memref<50x128xbf16, #tpu.memory_space<vmem>>, vector<3x128xbf16>,
    %cst_11 = arith.constant 0.000000e+00 : bf16
    %30 = vector.broadcast %cst_11 : bf16 to vector<3x128xbf16>
    %c47 = arith.constant 47 : index
    %c0_12 = arith.constant 0 : index
    %31 = vector.load %arg6[%c47, %c0_12] : memref<50x128xbf16, #tpu.memory_space<vmem>>, vector<3x128xbf16>
    tpu.vector_store %arg6[%c47, %c0_12], %30 {strides = array<i32>} : memref<50x128xbf16, #tpu.memory_space<vmem>>, vector<3x128xbf16>,
    %c0_13 = arith.constant 0 : index
    %c0_14 = arith.constant 0 : index
    %32 = vector.load %arg0[%c0_13, %c0_14] : memref<44x128xbf16, #tpu.memory_space<vmem>>, vector<44x128xbf16>
    %c3_15 = arith.constant 3 : index
    %c0_16 = arith.constant 0 : index
    %33 = vector.load %arg6[%c3_15, %c0_16] : memref<50x128xbf16, #tpu.memory_space<vmem>>, vector<44x128xbf16>
    tpu.vector_store %arg6[%c3_15, %c0_16], %32 {strides = array<i32>} : memref<50x128xbf16, #tpu.memory_space<vmem>>, vector<44x128xbf16>,
    %c0_17 = arith.constant 0 : index
    %c0_18 = arith.constant 0 : index
    %34 = vector.load %arg6[%c0_17, %c0_18] : memref<50x128xbf16, #tpu.memory_space<vmem>>, vector<44x128xbf16>
    %c1_19 = arith.constant 1 : index
    %c0_20 = arith.constant 0 : index
    %35 = vector.load %arg6[%c1_19, %c0_20] : memref<50x128xbf16, #tpu.memory_space<vmem>>, vector<44x128xbf16>
    %c2_21 = arith.constant 2 : index
    %c0_22 = arith.constant 0 : index
    %36 = vector.load %arg6[%c2_21, %c0_22] : memref<50x128xbf16, #tpu.memory_space<vmem>>, vector<44x128xbf16>
    %c3_23 = arith.constant 3 : index
    %c0_24 = arith.constant 0 : index
    %37 = vector.load %arg6[%c3_23, %c0_24] : memref<50x128xbf16, #tpu.memory_space<vmem>>, vector<44x128xbf16>
    %c4_25 = arith.constant 4 : index
    %c0_26 = arith.constant 0 : index
    %38 = vector.load %arg6[%c4_25, %c0_26] : memref<50x128xbf16, #tpu.memory_space<vmem>>, vector<44x128xbf16>
    %c5_27 = arith.constant 5 : index
    %c0_28 = arith.constant 0 : index
    %39 = vector.load %arg6[%c5_27, %c0_28] : memref<50x128xbf16, #tpu.memory_space<vmem>>, vector<44x128xbf16>
    %c6 = arith.constant 6 : index
    %c0_29 = arith.constant 0 : index
    %40 = vector.load %arg6[%c6, %c0_29] : memref<50x128xbf16, #tpu.memory_space<vmem>>, vector<44x128xbf16>
    %41 = tpu.concatenate %34, %35, %36, %37, %38, %39, %40 in 1 : vector<44x128xbf16>, vector<44x128xbf16>, vector<44x128xbf16>, vector<44x128xbf16>, vector<44x128xbf16>, vector<44x128xbf16>, vector<44x128xbf16> -> vector<44x896xbf16>
    %c0_30 = arith.constant 0 : index
    %c0_31 = arith.constant 0 : index
    %42 = vector.load %arg1[%c0_30, %c0_31] : memref<896x128xbf16, #tpu.memory_space<vmem>>, vector<896x128xbf16>
    %cst_32 = arith.constant dense<0.000000e+00> : vector<44x128xf32>
    %43 = tpu.matmul %41, %42, %cst_32 {dimension_numbers = #tpu.dot_dimension_numbers<[1], [0], [0], [1], [0, 0, 1, 1], [], []>} : vector<44x896xbf16>, vector<896x128xbf16>, vector<44x128xf32> -> vector<44x128xf32>
    %44 = vector.broadcast %22 : vector<1x128xf32> to vector<44x128xf32>
    %45 = arith.addf %43, %44 : vector<44x128xf32>
    %cst_33 = arith.constant 0.000000e+00 : f32
    %46 = vector.broadcast %cst_33 : f32 to vector<44x128xf32>
    %47 = arith.select %21, %45, %46 : vector<44x128xi1>, vector<44x128xf32>
    %cst_34 = arith.constant dense<0.000000e+00> : vector<128xf32>
    %48 = vector.multi_reduction <add>, %47, %cst_34 [0] : vector<44x128xf32> to vector<128xf32>
    %49 = vector.shape_cast %48 : vector<128xf32> to vector<1x128xf32>
    %cst_35 = arith.constant 3.125000e-02 : f32
    %50 = vector.broadcast %cst_35 : f32 to vector<1x128xf32>
    %51 = arith.mulf %49, %50 : vector<1x128xf32>
    %52 = vector.broadcast %51 : vector<1x128xf32> to vector<44x128xf32>
    %53 = arith.subf %45, %52 : vector<44x128xf32>
    %cst_36 = arith.constant 0.000000e+00 : f32
    %54 = vector.broadcast %cst_36 : f32 to vector<44x128xf32>
    %55 = arith.select %21, %53, %54 : vector<44x128xi1>, vector<44x128xf32>
    %56 = arith.mulf %55, %55 : vector<44x128xf32>
    %cst_37 = arith.constant dense<0.000000e+00> : vector<128xf32>
    %57 = vector.multi_reduction <add>, %56, %cst_37 [0] : vector<44x128xf32> to vector<128xf32>
    %58 = vector.shape_cast %57 : vector<128xf32> to vector<1x128xf32>
    %cst_38 = arith.constant 3.125000e-02 : f32
    %59 = vector.broadcast %cst_38 : f32 to vector<1x128xf32>
    %60 = arith.mulf %58, %59 : vector<1x128xf32>
    %61 = vector.broadcast %51 : vector<1x128xf32> to vector<44x128xf32>
    %62 = arith.subf %45, %61 : vector<44x128xf32>
    %cst_39 = arith.constant 9.99999974E-6 : f32
    %63 = vector.broadcast %cst_39 : f32 to vector<1x128xf32>
    %64 = arith.addf %60, %63 : vector<1x128xf32>
    %65 = math.rsqrt %64 : vector<1x128xf32>
    %66 = arith.mulf %23, %65 : vector<1x128xf32>
    %67 = vector.broadcast %66 : vector<1x128xf32> to vector<44x128xf32>
    %68 = arith.mulf %62, %67 : vector<44x128xf32>
    %69 = vector.broadcast %24 : vector<1x128xf32> to vector<44x128xf32>
    %70 = arith.addf %68, %69 : vector<44x128xf32>
    %cst_40 = arith.constant 0.000000e+00 : f32
    %71 = vector.broadcast %cst_40 : f32 to vector<44x128xf32>
    %72 = arith.cmpf oge, %70, %71 : vector<44x128xf32>
    %cst_41 = arith.constant 2.000000e-01 : f32
    %73 = vector.broadcast %cst_41 : f32 to vector<44x128xf32>
    %74 = arith.mulf %73, %70 : vector<44x128xf32>
    %75 = arith.select %72, %70, %74 : vector<44x128xi1>, vector<44x128xf32>
    %cst_42 = arith.constant 0.000000e+00 : bf16
    %76 = vector.broadcast %cst_42 : bf16 to vector<3x128xbf16>
    %c0_43 = arith.constant 0 : index
    %c0_44 = arith.constant 0 : index
    %77 = vector.load %arg7[%c0_43, %c0_44] : memref<50x128xbf16, #tpu.memory_space<vmem>>, vector<3x128xbf16>
    tpu.vector_store %arg7[%c0_43, %c0_44], %76 {strides = array<i32>} : memref<50x128xbf16, #tpu.memory_space<vmem>>, vector<3x128xbf16>,
    %cst_45 = arith.constant 0.000000e+00 : bf16
    %78 = vector.broadcast %cst_45 : bf16 to vector<3x128xbf16>
    %c47_46 = arith.constant 47 : index
    %c0_47 = arith.constant 0 : index
    %79 = vector.load %arg7[%c47_46, %c0_47] : memref<50x128xbf16, #tpu.memory_space<vmem>>, vector<3x128xbf16>
    tpu.vector_store %arg7[%c47_46, %c0_47], %78 {strides = array<i32>} : memref<50x128xbf16, #tpu.memory_space<vmem>>, vector<3x128xbf16>,
    %cst_48 = arith.constant 0.000000e+00 : f32
    %80 = vector.broadcast %cst_48 : f32 to vector<44x128xf32>
    %81 = arith.select %21, %75, %80 : vector<44x128xi1>, vector<44x128xf32>
    %82 = arith.truncf %81 : vector<44x128xf32> to vector<44x128xbf16>
    %c3_49 = arith.constant 3 : index
    %c0_50 = arith.constant 0 : index
    %83 = vector.load %arg7[%c3_49, %c0_50] : memref<50x128xbf16, #tpu.memory_space<vmem>>, vector<44x128xbf16>
    tpu.vector_store %arg7[%c3_49, %c0_50], %82 {strides = array<i32>} : memref<50x128xbf16, #tpu.memory_space<vmem>>, vector<44x128xbf16>,
    %c0_51 = arith.constant 0 : index
    %c0_52 = arith.constant 0 : index
    %84 = vector.load %arg7[%c0_51, %c0_52] : memref<50x128xbf16, #tpu.memory_space<vmem>>, vector<44x128xbf16>
    %c1_53 = arith.constant 1 : index
    %c0_54 = arith.constant 0 : index
    %85 = vector.load %arg7[%c1_53, %c0_54] : memref<50x128xbf16, #tpu.memory_space<vmem>>, vector<44x128xbf16>
    %c2_55 = arith.constant 2 : index
    %c0_56 = arith.constant 0 : index
    %86 = vector.load %arg7[%c2_55, %c0_56] : memref<50x128xbf16, #tpu.memory_space<vmem>>, vector<44x128xbf16>
    %c3_57 = arith.constant 3 : index
    %c0_58 = arith.constant 0 : index
    %87 = vector.load %arg7[%c3_57, %c0_58] : memref<50x128xbf16, #tpu.memory_space<vmem>>, vector<44x128xbf16>
    %c4_59 = arith.constant 4 : index
    %c0_60 = arith.constant 0 : index
    %88 = vector.load %arg7[%c4_59, %c0_60] : memref<50x128xbf16, #tpu.memory_space<vmem>>, vector<44x128xbf16>
    %c5_61 = arith.constant 5 : index
    %c0_62 = arith.constant 0 : index
    %89 = vector.load %arg7[%c5_61, %c0_62] : memref<50x128xbf16, #tpu.memory_space<vmem>>, vector<44x128xbf16>
    %c6_63 = arith.constant 6 : index
    %c0_64 = arith.constant 0 : index
    %90 = vector.load %arg7[%c6_63, %c0_64] : memref<50x128xbf16, #tpu.memory_space<vmem>>, vector<44x128xbf16>
    %91 = tpu.concatenate %84, %85, %86, %87, %88, %89, %90 in 1 : vector<44x128xbf16>, vector<44x128xbf16>, vector<44x128xbf16>, vector<44x128xbf16>, vector<44x128xbf16>, vector<44x128xbf16>, vector<44x128xbf16> -> vector<44x896xbf16>
    %c0_65 = arith.constant 0 : index
    %c0_66 = arith.constant 0 : index
    %92 = vector.load %arg2[%c0_65, %c0_66] : memref<896x128xbf16, #tpu.memory_space<vmem>>, vector<896x128xbf16>
    %cst_67 = arith.constant dense<0.000000e+00> : vector<44x128xf32>
    %93 = tpu.matmul %91, %92, %cst_67 {dimension_numbers = #tpu.dot_dimension_numbers<[1], [0], [0], [1], [0, 0, 1, 1], [], []>} : vector<44x896xbf16>, vector<896x128xbf16>, vector<44x128xf32> -> vector<44x128xf32>
    %94 = vector.broadcast %25 : vector<1x128xf32> to vector<44x128xf32>
    %95 = arith.addf %93, %94 : vector<44x128xf32>
    %cst_68 = arith.constant 0.000000e+00 : f32
    %96 = vector.broadcast %cst_68 : f32 to vector<44x128xf32>
    %97 = arith.select %21, %95, %96 : vector<44x128xi1>, vector<44x128xf32>
    %cst_69 = arith.constant dense<0.000000e+00> : vector<128xf32>
    %98 = vector.multi_reduction <add>, %97, %cst_69 [0] : vector<44x128xf32> to vector<128xf32>
    %99 = vector.shape_cast %98 : vector<128xf32> to vector<1x128xf32>
    %cst_70 = arith.constant 3.125000e-02 : f32
    %100 = vector.broadcast %cst_70 : f32 to vector<1x128xf32>
    %101 = arith.mulf %99, %100 : vector<1x128xf32>
    %102 = vector.broadcast %101 : vector<1x128xf32> to vector<44x128xf32>
    %103 = arith.subf %95, %102 : vector<44x128xf32>
    %cst_71 = arith.constant 0.000000e+00 : f32
    %104 = vector.broadcast %cst_71 : f32 to vector<44x128xf32>
    %105 = arith.select %21, %103, %104 : vector<44x128xi1>, vector<44x128xf32>
    %106 = arith.mulf %105, %105 : vector<44x128xf32>
    %cst_72 = arith.constant dense<0.000000e+00> : vector<128xf32>
    %107 = vector.multi_reduction <add>, %106, %cst_72 [0] : vector<44x128xf32> to vector<128xf32>
    %108 = vector.shape_cast %107 : vector<128xf32> to vector<1x128xf32>
    %cst_73 = arith.constant 3.125000e-02 : f32
    %109 = vector.broadcast %cst_73 : f32 to vector<1x128xf32>
    %110 = arith.mulf %108, %109 : vector<1x128xf32>
    %111 = vector.broadcast %101 : vector<1x128xf32> to vector<44x128xf32>
    %112 = arith.subf %95, %111 : vector<44x128xf32>
    %cst_74 = arith.constant 9.99999974E-6 : f32
    %113 = vector.broadcast %cst_74 : f32 to vector<1x128xf32>
    %114 = arith.addf %110, %113 : vector<1x128xf32>
    %115 = math.rsqrt %114 : vector<1x128xf32>
    %116 = arith.mulf %26, %115 : vector<1x128xf32>
    %117 = vector.broadcast %116 : vector<1x128xf32> to vector<44x128xf32>
    %118 = arith.mulf %112, %117 : vector<44x128xf32>
    %119 = vector.broadcast %27 : vector<1x128xf32> to vector<44x128xf32>
    %120 = arith.addf %118, %119 : vector<44x128xf32>
    %cst_75 = arith.constant 0.000000e+00 : f32
    %121 = vector.broadcast %cst_75 : f32 to vector<44x128xf32>
    %122 = arith.cmpf oge, %120, %121 : vector<44x128xf32>
    %cst_76 = arith.constant 2.000000e-01 : f32
    %123 = vector.broadcast %cst_76 : f32 to vector<44x128xf32>
    %124 = arith.mulf %123, %120 : vector<44x128xf32>
    %125 = arith.select %122, %120, %124 : vector<44x128xi1>, vector<44x128xf32>
    %cst_77 = arith.constant 0xFF800000 : f32
    %126 = vector.broadcast %cst_77 : f32 to vector<44x128xf32>
    %127 = arith.select %21, %125, %126 : vector<44x128xi1>, vector<44x128xf32>
    %c0_78 = arith.constant 0 : index
    %c0_79 = arith.constant 0 : index
    %128 = vector.load %arg4[%c0_78, %c0_79] : memref<52x128xf32, #tpu.memory_space<vmem>>, vector<44x128xf32>
    tpu.vector_store %arg4[%c0_78, %c0_79], %127 {strides = array<i32>} : memref<52x128xf32, #tpu.memory_space<vmem>>, vector<44x128xf32>,
    %cst_80 = arith.constant 0xFF800000 : f32
    %129 = vector.broadcast %cst_80 : f32 to vector<8x128xf32>
    %c44 = arith.constant 44 : index
    %c0_81 = arith.constant 0 : index
    %130 = vector.load %arg4[%c44, %c0_81] : memref<52x128xf32, #tpu.memory_space<vmem>>, vector<8x128xf32>
    tpu.vector_store %arg4[%c44, %c0_81], %129 {strides = array<i32>} : memref<52x128xf32, #tpu.memory_space<vmem>>, vector<8x128xf32>,
    %c1_82 = arith.constant 1 : index
    %c0_83 = arith.constant 0 : index
    %131 = tpu.strided_load %arg4[%c1_82, %c0_83] {strides = array<i32: 2, 1>} : memref<52x128xf32, #tpu.memory_space<vmem>>, vector<22x128xf32>
    %c2_84 = arith.constant 2 : index
    %c0_85 = arith.constant 0 : index
    %132 = tpu.strided_load %arg4[%c2_84, %c0_85] {strides = array<i32: 2, 1>} : memref<52x128xf32, #tpu.memory_space<vmem>>, vector<22x128xf32>
    %133 = arith.maximumf %131, %132 : vector<22x128xf32>
    %c3_86 = arith.constant 3 : index
    %c0_87 = arith.constant 0 : index
    %134 = tpu.strided_load %arg4[%c3_86, %c0_87] {strides = array<i32: 2, 1>} : memref<52x128xf32, #tpu.memory_space<vmem>>, vector<22x128xf32>
    %135 = arith.maximumf %133, %134 : vector<22x128xf32>
    %c4_88 = arith.constant 4 : index
    %c0_89 = arith.constant 0 : index
    %136 = tpu.strided_load %arg4[%c4_88, %c0_89] {strides = array<i32: 2, 1>} : memref<52x128xf32, #tpu.memory_space<vmem>>, vector<22x128xf32>
    %137 = arith.maximumf %135, %136 : vector<22x128xf32>
    %c5_90 = arith.constant 5 : index
    %c0_91 = arith.constant 0 : index
    %138 = tpu.strided_load %arg4[%c5_90, %c0_91] {strides = array<i32: 2, 1>} : memref<52x128xf32, #tpu.memory_space<vmem>>, vector<22x128xf32>
    %139 = arith.maximumf %137, %138 : vector<22x128xf32>
    %c0_92 = arith.constant 0 : index
    %c0_93 = arith.constant 0 : index
    %140 = vector.load %arg5[%c0_92, %c0_93] : memref<22x128xf32, #tpu.memory_space<vmem>>, vector<22x128xf32>
    tpu.vector_store %arg5[%c0_92, %c0_93], %139 {strides = array<i32>} : memref<22x128xf32, #tpu.memory_space<vmem>>, vector<22x128xf32>,
    return
  }
}

</mosaic_0001>

<llo_original>
// kernel: tpu_custom_call.1
$region0: #{tpu_custom_call.1}
  #allocation0 [shape = 'u32[]', space=smem, size = 0x4, offset = 0x4, fixed_abs, tag = 'smem constant byte address 0x4 - core index']
  #allocation1 [shape = 'u32[144,128]{1,0:T(1,128)}', space=vmem, size = 0x12000, scoped, tag = 'internal scratch']
  #allocation2 [shape = 'bf16[50,128]{1,0:T(8,128)(2,1)}', space=vmem, size = 0x3800, scoped, tag = 'scratch operand']
  #allocation3 [shape = 'bf16[50,128]{1,0:T(8,128)(2,1)}', space=vmem, size = 0x3800, scoped, tag = 'scratch operand']
  %s0 = inlined_call_operand.hbm [shape: bf16[44,128], index: 0, kind: input, shape index: {}]
  %s1 = inlined_call_operand.hbm [shape: bf16[896,128], index: 1, kind: input, shape index: {}]
  %s2 = inlined_call_operand.hbm [shape: bf16[896,128], index: 2, kind: input, shape index: {}]
  %s3 = inlined_call_operand.vmem [shape: f32[6,128], index: 3, kind: input, shape index: {}]
  %s4 = inlined_call_operand.hbm [shape: f32[52,128], index: 4, kind: output, shape index: {0}]
  %s5 = inlined_call_operand.hbm [shape: f32[22,128], index: 5, kind: output, shape index: {1}]
  %6 = xla_tuple %s4, %s5
  %s7 = sld [smem:[#allocation0]]
  $region46: #{tpu_custom_call.1} parent=0
    _
  %s9 = ssub.s32 1, %s7
  %s10 = scalar_select 0, %s9, %s7
  $region1: #{tpu_custom_call.1} parent=0
    #allocation4 [shape = 'u8[12288]{0}', space=vmem, size = 0x3000, scoped, tag = 'input window, operand 0, single buffered']
    #allocation5 [shape = 's32[1]{0}', space=sflag, size = 0x4, scoped, tag = 'scoped memory for tpu_custom_call.1']
    #allocation6 [shape = 's32[1]{0}', space=sflag, size = 0x4, scoped, tag = 'scoped memory for tpu_custom_call.1']
    #allocation7 [shape = 'u8[229376]{0}', space=vmem, size = 0x38000, scoped, tag = 'input window, operand 1, single buffered']
    #allocation8 [shape = 's32[1]{0}', space=sflag, size = 0x4, scoped, tag = 'scoped memory for tpu_custom_call.1']
    #allocation9 [shape = 'u8[229376]{0}', space=vmem, size = 0x38000, scoped, tag = 'input window, operand 2, single buffered']
    #allocation10 [shape = 'u8[28672]{0}', space=vmem, size = 0x7000, scoped, tag = 'output window, operand 0, single buffered']
    #allocation11 [shape = 'u8[12288]{0}', space=vmem, size = 0x3000, scoped, tag = 'output window, operand 1, single buffered']
    #allocation12 [shape = 's32[1]{0}', space=sflag, size = 0x4, scoped, tag = 'scoped memory for tpu_custom_call.1']
    %11 = vsyncpa [#allocation5], 0
    %12 = vsyncpa [#allocation8], 0
    %13 = vsyncpa [#allocation6], 0
    %14 = vsyncpa [#allocation12], 0
    // Predicated region
    $region2: #{tpu_custom_call.1} parent=1 // pred_check
      _
    $region3: #{tpu_custom_call.1} parent=1 // pred_check_branch
      %16 = sbr.rel (0) target = $region5
    $region4: #{tpu_custom_call.1} parent=1 // pred_region
      %s18 = ssub.s32 384, 384
      %19 = vsyncadd [#allocation5], %s18
      %s20 = sshll.u32 [#allocation4], 4
      %s21 = int_to_ptr.vmem [resolvable:$true] %s20
      %26 = dma.hbm_to_vmem [thread:$0]  %s0, 384, %s21, [#allocation5], 64, 64, 4
    $region5: #{tpu_custom_call.1} parent=1 // pred_fallthru
      _
    // Predicated region
    $region6: #{tpu_custom_call.1} parent=1 // pred_check
      _
    $region7: #{tpu_custom_call.1} parent=1 // pred_check_branch
      %28 = sbr.rel (0) target = $region9
    $region8: #{tpu_custom_call.1} parent=1 // pred_region
      %s30 = ssub.s32 7168, 7168
      %31 = vsyncadd [#allocation8], %s30
      %s32 = sshll.u32 [#allocation7], 4
      %s33 = int_to_ptr.vmem [resolvable:$true] %s32
      %38 = dma.hbm_to_vmem [thread:$0]  %s1, 7168, %s33, [#allocation8], 64, 64, 4
    $region9: #{tpu_custom_call.1} parent=1 // pred_fallthru
      _
    // Predicated region
    $region10: #{tpu_custom_call.1} parent=1 // pred_check
      _
    $region11: #{tpu_custom_call.1} parent=1 // pred_check_branch
      %40 = sbr.rel (0) target = $region13
    $region12: #{tpu_custom_call.1} parent=1 // pred_region
      %s42 = ssub.s32 7168, 7168
      %43 = vsyncadd [#allocation8], %s42
      %s44 = sshll.u32 [#allocation9], 4
      %s45 = int_to_ptr.vmem [resolvable:$true] %s44
      %50 = dma.hbm_to_vmem [thread:$0]  %s2, 7168, %s45, [#allocation8], 64, 64, 4
    $region13: #{tpu_custom_call.1} parent=1 // pred_fallthru
      _
    // Predicated region
    $region14: #{tpu_custom_call.1} parent=1 // pred_check
      _
    $region15: #{tpu_custom_call.1} parent=1 // pred_check_branch
      %52 = sbr.rel (0) target = $region17
    $region16: #{tpu_custom_call.1} parent=1 // pred_region
      _
    $region17: #{tpu_custom_call.1} parent=1 // pred_fallthru
      _
    // Predicated region
    $region18: #{tpu_custom_call.1} parent=1 // pred_check
      _
    $region19: #{tpu_custom_call.1} parent=1 // pred_check_branch
      %54 = sbr.rel (0) target = $region21
    $region20: #{tpu_custom_call.1} parent=1 // pred_region
      %55 = dma.done [#allocation5], 384
    $region21: #{tpu_custom_call.1} parent=1 // pred_fallthru
      _
    // Predicated region
    $region22: #{tpu_custom_call.1} parent=1 // pred_check
      _
    $region23: #{tpu_custom_call.1} parent=1 // pred_check_branch
      %57 = sbr.rel (0) target = $region25
    $region24: #{tpu_custom_call.1} parent=1 // pred_region
      %58 = dma.done [#allocation8], 7168
    $region25: #{tpu_custom_call.1} parent=1 // pred_fallthru
      _
    // Predicated region
    $region26: #{tpu_custom_call.1} parent=1 // pred_check
      _
    $region27: #{tpu_custom_call.1} parent=1 // pred_check_branch
      %60 = sbr.rel (0) target = $region29
    $region28: #{tpu_custom_call.1} parent=1 // pred_region
      %61 = dma.done [#allocation8], 7168
    $region29: #{tpu_custom_call.1} parent=1 // pred_fallthru
      _
    %v63 = vlaneseq
    %v64 = vshrl.u32 %v63, 7
    %v65 = vadd.s32 %v64, 8
    %v66 = vadd.s32 %v64, 16
    %v67 = vadd.s32 %v64, 24
    %v68 = vadd.s32 %v64, 32
    %v69 = vadd.s32 %v64, 40
    %vm70 = vcmp.lt.s32.totalorder %v64, 0
    %v71 = vsub.s32 0, %v64
    %v72 = vsel %vm70, %v71, %v64
    %v73 = vmul.u32.u64.compose %v72, 3123612579
    %v74 = vextract.low.u32 %v73
    %v75 = vextract.high.u32 %v73
    %v76 = vshrl.u32 %v75, 4
    %v77 = vmul.u32 %v76, 22
    %v78 = vsub.s32 %v72, %v77
    %v79 = vsub.s32 0, %v78
    %v80 = vsel %vm70, %v79, %v78
    %vm81 = vcmp.lt.s32.totalorder %v65, 0
    %v82 = vsub.s32 0, %v65
    %v83 = vsel %vm81, %v82, %v65
    %v84 = vmul.u32.u64.compose %v83, 3123612579
    %v85 = vextract.low.u32 %v84
    %v86 = vextract.high.u32 %v84
    %v87 = vshrl.u32 %v86, 4
    %v88 = vmul.u32 %v87, 22
    %v89 = vsub.s32 %v83, %v88
    %v90 = vsub.s32 0, %v89
    %v91 = vsel %vm81, %v90, %v89
    %vm92 = vcmp.lt.s32.totalorder %v66, 0
    %v93 = vsub.s32 0, %v66
    %v94 = vsel %vm92, %v93, %v66
    %v95 = vmul.u32.u64.compose %v94, 3123612579
    %v96 = vextract.low.u32 %v95
    %v97 = vextract.high.u32 %v95
    %v98 = vshrl.u32 %v97, 4
    %v99 = vmul.u32 %v98, 22
    %v100 = vsub.s32 %v94, %v99
    %v101 = vsub.s32 0, %v100
    %v102 = vsel %vm92, %v101, %v100
    %vm103 = vcmp.lt.s32.totalorder %v67, 0
    %v104 = vsub.s32 0, %v67
    %v105 = vsel %vm103, %v104, %v67
    %v106 = vmul.u32.u64.compose %v105, 3123612579
    %v107 = vextract.low.u32 %v106
    %v108 = vextract.high.u32 %v106
    %v109 = vshrl.u32 %v108, 4
    %v110 = vmul.u32 %v109, 22
    %v111 = vsub.s32 %v105, %v110
    %v112 = vsub.s32 0, %v111
    %v113 = vsel %vm103, %v112, %v111
    %vm114 = vcmp.lt.s32.totalorder %v68, 0
    %v115 = vsub.s32 0, %v68
    %v116 = vsel %vm114, %v115, %v68
    %v117 = vmul.u32.u64.compose %v116, 3123612579
    %v118 = vextract.low.u32 %v117
    %v119 = vextract.high.u32 %v117
    %v120 = vshrl.u32 %v119, 4
    %v121 = vmul.u32 %v120, 22
    %v122 = vsub.s32 %v116, %v121
    %v123 = vsub.s32 0, %v122
    %v124 = vsel %vm114, %v123, %v122
    %vm125 = vcmp.lt.s32.totalorder %v69, 0
    %v126 = vsub.s32 0, %v69
    %v127 = vsel %vm125, %v126, %v69
    %v128 = vmul.u32.u64.compose %v127, 3123612579
    %v129 = vextract.low.u32 %v128
    %v130 = vextract.high.u32 %v128
    %v131 = vshrl.u32 %v130, 4
    %v132 = vmul.u32 %v131, 22
    %v133 = vsub.s32 %v127, %v132
    %v134 = vsub.s32 0, %v133
    %v135 = vsel %vm125, %v134, %v133
    %vm136 = vcmp.ne.s32.totalorder %v80, 0
    %vm137 = vcmp.ne.s32.totalorder %v91, 0
    %vm138 = vcmp.ne.s32.totalorder %v102, 0
    %vm139 = vcmp.ne.s32.totalorder %v113, 0
    %vm140 = vcmp.ne.s32.totalorder %v124, 0
    %vm141 = vcmp.ne.s32.totalorder %v135, 0
    %vm142 = vcmp.lt.s32.totalorder %v80, 0
    %vm143 = vcmp.lt.s32.totalorder %v91, 0
    %vm144 = vcmp.lt.s32.totalorder %v102, 0
    %vm145 = vcmp.lt.s32.totalorder %v113, 0
    %vm146 = vcmp.lt.s32.totalorder %v124, 0
    %vm147 = vcmp.lt.s32.totalorder %v135, 0
    %vm148 = vmand %vm142, %vm136
    %vm149 = vmand %vm143, %vm137
    %vm150 = vmand %vm144, %vm138
    %vm151 = vmand %vm145, %vm139
    %vm152 = vmand %vm146, %vm140
    %vm153 = vmand %vm147, %vm141
    %v154 = vadd.s32 %v80, 22
    %v155 = vadd.s32 %v91, 22
    %v156 = vadd.s32 %v102, 22
    %v157 = vadd.s32 %v113, 22
    %v158 = vadd.s32 %v124, 22
    %v159 = vadd.s32 %v135, 22
    %v160 = vsel %vm148, %v154, %v80
    %v161 = vsel %vm149, %v155, %v91
    %v162 = vsel %vm150, %v156, %v102
    %v163 = vsel %vm151, %v157, %v113
    %v164 = vsel %vm152, %v158, %v124
    %v165 = vsel %vm153, %v159, %v135
    %vm166 = vcmp.ge.s32.totalorder %v160, 3
    %vm167 = vcmp.ge.s32.totalorder %v161, 3
    %vm168 = vcmp.ge.s32.totalorder %v162, 3
    %vm169 = vcmp.ge.s32.totalorder %v163, 3
    %vm170 = vcmp.ge.s32.totalorder %v164, 3
    %vm171 = vcmp.ge.s32.totalorder %v165, 3
    %vm172 = vcmp.lt.s32.totalorder %v160, 19
    %vm173 = vcmp.lt.s32.totalorder %v161, 19
    %vm174 = vcmp.lt.s32.totalorder %v162, 19
    %vm175 = vcmp.lt.s32.totalorder %v163, 19
    %vm176 = vcmp.lt.s32.totalorder %v164, 19
    %vm177 = vcmp.lt.s32.totalorder %v165, 19
    %vm178 = vmand %vm166, %vm172
    %vm179 = vmand %vm167, %vm173
    %vm180 = vmand %vm168, %vm174
    %vm181 = vmand %vm169, %vm175
    %vm182 = vmand %vm170, %vm176
    %vm183 = vmand %vm171, %vm177
    %v184 = vld [vmem:[%s3] sm:$0x1]
    %v185 = vld [vmem:[%s3 + $0x1] sm:$0x1]
    %v186 = vld [vmem:[%s3 + $0x2] sm:$0x1]
    %v187 = vld [vmem:[%s3 + $0x3] sm:$0x1]
    %v188 = vld [vmem:[%s3 + $0x4] sm:$0x1]
    %v189 = vld [vmem:[%s3 + $0x5] sm:$0x1]
    %vm190 = vcmask 1041408
    %vm191 = vsmask.f32 1280
    %vm192 = vmand %vm190, %vm191
    %v193 = vld [vmem:[#allocation2] sm:$0x3]
    %v194 = vsel %vm192, 0, %v193
    %195 = vst [vmem:[#allocation2] sm:$0x3] %v194
    %vm196 = vcmask 1043459
    %vm197 = vsmask.f32 7950
    %vm198 = vmand %vm196, %vm197
    %v199 = vld [vmem:[#allocation2 + $0x14] sm:$0x8]
    %v200 = vsel %vm198, 0, %v199
    %201 = vst [vmem:[#allocation2 + $0x14] sm:$0x8] %v200
    %202 = vst [vmem:[#allocation2 + $0x18] sm:$0x1] 0
    %v203 = vld [vmem:[#allocation4] sm:$0xf]
    %v204 = vld [vmem:[#allocation4 + $0x4] sm:$0xf]
    %v205 = vld [vmem:[#allocation4 + $0x8] sm:$0xf]
    %v206 = vld [vmem:[#allocation4 + $0xc] sm:$0xf]
    %v207 = vld [vmem:[#allocation4 + $0x10] sm:$0xf]
    %v208 = vld [vmem:[#allocation4 + $0x14] sm:$0x3]
    %vm209 = vsmask.f32 5392
    %vm210 = vmor %vm191, %vm209
    %v212 = vshrl.u32 %v203, 16
    %v214 = vrot.slane %v212, 6
    %v215 = vshll.u32 %v203, 16
    %v217 = vrot.slane %v215, 7
    %v218 = vor.u32 %v214, %v217
    %v219 = vrot.slane %v218, 4
    %v221 = vshrl.u32 %v204, 16
    %v223 = vrot.slane %v221, 6
    %v224 = vshll.u32 %v204, 16
    %v226 = vrot.slane %v224, 7
    %v227 = vor.u32 %v223, %v226
    %v228 = vsel %vm210, %v219, %v227
    %v229 = vrot.slane %v227, 4
    %v231 = vshrl.u32 %v205, 16
    %v233 = vrot.slane %v231, 6
    %v234 = vshll.u32 %v205, 16
    %v236 = vrot.slane %v234, 7
    %v237 = vor.u32 %v233, %v236
    %v238 = vsel %vm210, %v229, %v237
    %v239 = vrot.slane %v237, 4
    %v241 = vshrl.u32 %v206, 16
    %v243 = vrot.slane %v241, 6
    %v244 = vshll.u32 %v206, 16
    %v246 = vrot.slane %v244, 7
    %v247 = vor.u32 %v243, %v246
    %v248 = vsel %vm210, %v239, %v247
    %v249 = vrot.slane %v247, 4
    %v251 = vshrl.u32 %v207, 16
    %v253 = vrot.slane %v251, 6
    %v254 = vshll.u32 %v207, 16
    %v256 = vrot.slane %v254, 7
    %v257 = vor.u32 %v253, %v256
    %v258 = vsel %vm210, %v249, %v257
    %v259 = vrot.slane %v257, 4
    %v261 = vshrl.u32 %v208, 16
    %v263 = vrot.slane %v261, 6
    %v264 = vshll.u32 %v208, 16
    %v266 = vrot.slane %v264, 7
    %v267 = vor.u32 %v263, %v266
    %v268 = vsel %vm210, %v259, %v267
    %vm275 = vcmask 1043457
    %vm276 = vsmask.f32 7942
    %vm277 = vmand %vm275, %vm276
    %v278 = vld [vmem:[#allocation2] sm:$0xe]
    %v279 = vsel %vm277, %v218, %v278
    %280 = vst [vmem:[#allocation2] sm:$0xe] %v279
    %281 = vst [vmem:[#allocation2 + $0x4] sm:$0xf] %v228
    %282 = vst [vmem:[#allocation2 + $0x8] sm:$0xf] %v238
    %283 = vst [vmem:[#allocation2 + $0xc] sm:$0xf] %v248
    %284 = vst [vmem:[#allocation2 + $0x10] sm:$0xf] %v258
    %vm285 = vcmask 1043456
    %vm286 = vsmask.f32 3328
    %vm287 = vmand %vm285, %vm286
    %v288 = vld [vmem:[#allocation2 + $0x14] sm:$0xf]
    %v289 = vsel %vm287, %v268, %v288
    %290 = vst [vmem:[#allocation2 + $0x14] sm:$0xf] %v289
    %v291 = vld [vmem:[#allocation2] sm:$0xf]
    %v292 = vld [vmem:[#allocation2 + $0x4] sm:$0xf]
    %v293 = vld [vmem:[#allocation2 + $0x8] sm:$0xf]
    %v294 = vld [vmem:[#allocation2 + $0xc] sm:$0xf]
    %v295 = vld [vmem:[#allocation2 + $0x10] sm:$0xf]
    %v296 = vld [vmem:[#allocation2 + $0x14] sm:$0x3]
    %v297 = vld [vmem:[#allocation2 + $0x14] sm:$0x7]
    %v298 = vld [vmem:[#allocation2] sm:$0xe]
    %v299 = vld [vmem:[#allocation2 + $0x14] sm:$0xf]
    %v300 = vld [vmem:[#allocation2] sm:$0xc]
    %v301 = vld [vmem:[#allocation2 + $0x18] sm:$0x1]
    %v302 = vld [vmem:[#allocation2] sm:$0x8]
    %v309 = vunpack.c.l.b16 %v291
    %v310 = vunpack.c.l.b16 %v292
    %v311 = vunpack.c.l.b16 %v293
    %v312 = vunpack.c.l.b16 %v294
    %v313 = vunpack.c.l.b16 %v295
    %v314 = vunpack.c.l.b16 %v296
    %v315 = vpack.c.b16 %v310, %v309
    %v316 = vpack.c.b16 %v312, %v311
    %v317 = vpack.c.b16 %v314, %v313
    %v322 = vunpack.c.l.b16 %v297
    %v323 = vpack.c.b16 %v322, %v313
    %vm324 = vsmask.f32 7424
    %v326 = vshrl.u32 %v315, 16
    %v328 = vshll.u32 %v315, 16
    %v330 = vrot.slane %v328, 1
    %v331 = vor.u32 %v326, %v330
    %v333 = vshll.u32 %v316, 16
    %v335 = vrot.slane %v333, 1
    %v336 = vsel %vm324, %v331, %v335
    %v337 = vshrl.u32 %v316, 16
    %v339 = vor.u32 %v337, %v335
    %v341 = vshll.u32 %v323, 16
    %v343 = vrot.slane %v341, 1
    %v344 = vsel %vm324, %v339, %v343
    %v345 = vshrl.u32 %v323, 16
    %v347 = vor.u32 %v345, %v343
    %v352 = vunpack.c.l.b16 %v298
    %v353 = vpack.c.b16 %v310, %v352
    %vm354 = vcmask 1046528
    %v355 = vrot.slane %v353, 1
    %v356 = vrot.slane %v316, 1
    %v357 = vsel %vm354, %v355, %v356
    %v358 = vrot.slane %v323, 1
    %v359 = vsel %vm354, %v356, %v358
    %v364 = vunpack.c.l.b16 %v299
    %v365 = vpack.c.b16 %v364, %v313
    %vm366 = vsmask.f32 6400
    %v368 = vshrl.u32 %v353, 16
    %v370 = vrot.slane %v368, 1
    %v371 = vshll.u32 %v353, 16
    %v373 = vrot.slane %v371, 2
    %v374 = vor.u32 %v370, %v373
    %v375 = vrot.slane %v337, 1
    %v376 = vrot.slane %v333, 2
    %v377 = vor.u32 %v375, %v376
    %v378 = vsel %vm366, %v374, %v377
    %v380 = vshrl.u32 %v365, 16
    %v382 = vrot.slane %v380, 1
    %v383 = vshll.u32 %v365, 16
    %v385 = vrot.slane %v383, 2
    %v386 = vor.u32 %v382, %v385
    %v387 = vsel %vm366, %v377, %v386
    %v392 = vunpack.c.l.b16 %v300
    %v393 = vpack.c.b16 %v310, %v392
    %vm394 = vcmask 1045504
    %v395 = vrot.slane %v393, 2
    %v396 = vrot.slane %v316, 2
    %v397 = vsel %vm394, %v395, %v396
    %v398 = vrot.slane %v365, 2
    %v399 = vsel %vm394, %v396, %v398
    %v404 = vunpack.c.l.b16 %v301
    %v405 = vpack.c.b16 %v404, %v404
    %vm406 = vsmask.f32 5376
    %v408 = vshrl.u32 %v393, 16
    %v410 = vrot.slane %v408, 2
    %v411 = vshll.u32 %v393, 16
    %v413 = vrot.slane %v411, 3
    %v414 = vor.u32 %v410, %v413
    %v415 = vrot.slane %v337, 2
    %v416 = vrot.slane %v333, 3
    %v417 = vor.u32 %v415, %v416
    %v418 = vsel %vm406, %v414, %v417
    %v419 = vrot.slane %v380, 2
    %v420 = vrot.slane %v383, 3
    %v421 = vor.u32 %v419, %v420
    %v422 = vsel %vm406, %v417, %v421
    %v424 = vshll.u32 %v405, 16
    %v426 = vrot.slane %v424, 3
    %v427 = vsel %vm406, %v421, %v426
    %v432 = vunpack.c.l.b16 %v302
    %v433 = vpack.c.b16 %v310, %v432
    %vm434 = vcmask 1044480
    %v435 = vrot.slane %v433, 3
    %v436 = vrot.slane %v316, 3
    %v437 = vsel %vm434, %v435, %v436
    %v438 = vrot.slane %v365, 3
    %v439 = vsel %vm434, %v436, %v438
    %v440 = vrot.slane %v405, 3
    %v441 = vsel %vm434, %v438, %v440
    %v445 = vld [vmem:[#allocation7] sm:$0xf]
    %v446 = vld [vmem:[#allocation7 + $0x4] sm:$0xf]
    %v447 = vld [vmem:[#allocation7 + $0x8] sm:$0xf]
    %v448 = vld [vmem:[#allocation7 + $0xc] sm:$0xf]
    %v449 = vld [vmem:[#allocation7 + $0x10] sm:$0xf]
    %v450 = vld [vmem:[#allocation7 + $0x14] sm:$0xf]
    %v451 = vld [vmem:[#allocation7 + $0x18] sm:$0xf]
    %v452 = vld [vmem:[#allocation7 + $0x1c] sm:$0xf]
    %v453 = vld [vmem:[#allocation7 + $0x20] sm:$0xf]
    %v454 = vld [vmem:[#allocation7 + $0x24] sm:$0xf]
    %v455 = vld [vmem:[#allocation7 + $0x28] sm:$0xf]
    %v456 = vld [vmem:[#allocation7 + $0x2c] sm:$0xf]
    %v457 = vld [vmem:[#allocation7 + $0x30] sm:$0xf]
    %v458 = vld [vmem:[#allocation7 + $0x34] sm:$0xf]
    %v459 = vld [vmem:[#allocation7 + $0x38] sm:$0xf]
    %v460 = vld [vmem:[#allocation7 + $0x3c] sm:$0xf]
    %v461 = vld [vmem:[#allocation7 + $0x40] sm:$0xf]
    %v462 = vld [vmem:[#allocation7 + $0x44] sm:$0xf]
    %v463 = vld [vmem:[#allocation7 + $0x48] sm:$0xf]
    %v464 = vld [vmem:[#allocation7 + $0x4c] sm:$0xf]
    %v465 = vld [vmem:[#allocation7 + $0x50] sm:$0xf]
    %v466 = vld [vmem:[#allocation7 + $0x54] sm:$0xf]
    %v467 = vld [vmem:[#allocation7 + $0x58] sm:$0xf]
    %v468 = vld [vmem:[#allocation7 + $0x5c] sm:$0xf]
    %v469 = vld [vmem:[#allocation7 + $0x60] sm:$0xf]
    %v470 = vld [vmem:[#allocation7 + $0x64] sm:$0xf]
    %v471 = vld [vmem:[#allocation7 + $0x68] sm:$0xf]
    %v472 = vld [vmem:[#allocation7 + $0x6c] sm:$0xf]
    %v473 = vld [vmem:[#allocation7 + $0x70] sm:$0xf]
    %v474 = vld [vmem:[#allocation7 + $0x74] sm:$0xf]
    %v475 = vld [vmem:[#allocation7 + $0x78] sm:$0xf]
    %v476 = vld [vmem:[#allocation7 + $0x7c] sm:$0xf]
    %v477 = vld [vmem:[#allocation7 + $0x80] sm:$0xf]
    %v478 = vld [vmem:[#allocation7 + $0x84] sm:$0xf]
    %v479 = vld [vmem:[#allocation7 + $0x88] sm:$0xf]
    %v480 = vld [vmem:[#allocation7 + $0x8c] sm:$0xf]
    %v481 = vld [vmem:[#allocation7 + $0x90] sm:$0xf]
    %v482 = vld [vmem:[#allocation7 + $0x94] sm:$0xf]
    %v483 = vld [vmem:[#allocation7 + $0x98] sm:$0xf]
    %v484 = vld [vmem:[#allocation7 + $0x9c] sm:$0xf]
    %v485 = vld [vmem:[#allocation7 + $0xa0] sm:$0xf]
    %v486 = vld [vmem:[#allocation7 + $0xa4] sm:$0xf]
    %v487 = vld [vmem:[#allocation7 + $0xa8] sm:$0xf]
    %v488 = vld [vmem:[#allocation7 + $0xac] sm:$0xf]
    %v489 = vld [vmem:[#allocation7 + $0xb0] sm:$0xf]
    %v490 = vld [vmem:[#allocation7 + $0xb4] sm:$0xf]
    %v491 = vld [vmem:[#allocation7 + $0xb8] sm:$0xf]
    %v492 = vld [vmem:[#allocation7 + $0xbc] sm:$0xf]
    %v493 = vld [vmem:[#allocation7 + $0xc0] sm:$0xf]
    %v494 = vld [vmem:[#allocation7 + $0xc4] sm:$0xf]
    %v495 = vld [vmem:[#allocation7 + $0xc8] sm:$0xf]
    %v496 = vld [vmem:[#allocation7 + $0xcc] sm:$0xf]
    %v497 = vld [vmem:[#allocation7 + $0xd0] sm:$0xf]
    %v498 = vld [vmem:[#allocation7 + $0xd4] sm:$0xf]
    %v499 = vld [vmem:[#allocation7 + $0xd8] sm:$0xf]
    %v500 = vld [vmem:[#allocation7 + $0xdc] sm:$0xf]
    %v501 = vld [vmem:[#allocation7 + $0xe0] sm:$0xf]
    %v502 = vld [vmem:[#allocation7 + $0xe4] sm:$0xf]
    %v503 = vld [vmem:[#allocation7 + $0xe8] sm:$0xf]
    %v504 = vld [vmem:[#allocation7 + $0xec] sm:$0xf]
    %v505 = vld [vmem:[#allocation7 + $0xf0] sm:$0xf]
    %v506 = vld [vmem:[#allocation7 + $0xf4] sm:$0xf]
    %v507 = vld [vmem:[#allocation7 + $0xf8] sm:$0xf]
    %v508 = vld [vmem:[#allocation7 + $0xfc] sm:$0xf]
    %v509 = vld [vmem:[#allocation7 + $0x100] sm:$0xf]
    %v510 = vld [vmem:[#allocation7 + $0x104] sm:$0xf]
    %v511 = vld [vmem:[#allocation7 + $0x108] sm:$0xf]
    %v512 = vld [vmem:[#allocation7 + $0x10c] sm:$0xf]
    %v513 = vld [vmem:[#allocation7 + $0x110] sm:$0xf]
    %v514 = vld [vmem:[#allocation7 + $0x114] sm:$0xf]
    %v515 = vld [vmem:[#allocation7 + $0x118] sm:$0xf]
    %v516 = vld [vmem:[#allocation7 + $0x11c] sm:$0xf]
    %v517 = vld [vmem:[#allocation7 + $0x120] sm:$0xf]
    %v518 = vld [vmem:[#allocation7 + $0x124] sm:$0xf]
    %v519 = vld [vmem:[#allocation7 + $0x128] sm:$0xf]
    %v520 = vld [vmem:[#allocation7 + $0x12c] sm:$0xf]
    %v521 = vld [vmem:[#allocation7 + $0x130] sm:$0xf]
    %v522 = vld [vmem:[#allocation7 + $0x134] sm:$0xf]
    %v523 = vld [vmem:[#allocation7 + $0x138] sm:$0xf]
    %v524 = vld [vmem:[#allocation7 + $0x13c] sm:$0xf]
    %v525 = vld [vmem:[#allocation7 + $0x140] sm:$0xf]
    %v526 = vld [vmem:[#allocation7 + $0x144] sm:$0xf]
    %v527 = vld [vmem:[#allocation7 + $0x148] sm:$0xf]
    %v528 = vld [vmem:[#allocation7 + $0x14c] sm:$0xf]
    %v529 = vld [vmem:[#allocation7 + $0x150] sm:$0xf]
    %v530 = vld [vmem:[#allocation7 + $0x154] sm:$0xf]
    %v531 = vld [vmem:[#allocation7 + $0x158] sm:$0xf]
    %v532 = vld [vmem:[#allocation7 + $0x15c] sm:$0xf]
    %v533 = vld [vmem:[#allocation7 + $0x160] sm:$0xf]
    %v534 = vld [vmem:[#allocation7 + $0x164] sm:$0xf]
    %v535 = vld [vmem:[#allocation7 + $0x168] sm:$0xf]
    %v536 = vld [vmem:[#allocation7 + $0x16c] sm:$0xf]
    %v537 = vld [vmem:[#allocation7 + $0x170] sm:$0xf]
    %v538 = vld [vmem:[#allocation7 + $0x174] sm:$0xf]
    %v539 = vld [vmem:[#allocation7 + $0x178] sm:$0xf]
    %v540 = vld [vmem:[#allocation7 + $0x17c] sm:$0xf]
    %v541 = vld [vmem:[#allocation7 + $0x180] sm:$0xf]
    %v542 = vld [vmem:[#allocation7 + $0x184] sm:$0xf]
    %v543 = vld [vmem:[#allocation7 + $0x188] sm:$0xf]
    %v544 = vld [vmem:[#allocation7 + $0x18c] sm:$0xf]
    %v545 = vld [vmem:[#allocation7 + $0x190] sm:$0xf]
    %v546 = vld [vmem:[#allocation7 + $0x194] sm:$0xf]
    %v547 = vld [vmem:[#allocation7 + $0x198] sm:$0xf]
    %v548 = vld [vmem:[#allocation7 + $0x19c] sm:$0xf]
    %v549 = vld [vmem:[#allocation7 + $0x1a0] sm:$0xf]
    %v550 = vld [vmem:[#allocation7 + $0x1a4] sm:$0xf]
    %v551 = vld [vmem:[#allocation7 + $0x1a8] sm:$0xf]
    %v552 = vld [vmem:[#allocation7 + $0x1ac] sm:$0xf]
    %v553 = vld [vmem:[#allocation7 + $0x1b0] sm:$0xf]
    %v554 = vld [vmem:[#allocation7 + $0x1b4] sm:$0xf]
    %v555 = vld [vmem:[#allocation7 + $0x1b8] sm:$0xf]
    %v556 = vld [vmem:[#allocation7 + $0x1bc] sm:$0xf]
    %v557 = vlaneseq
    %v558 = vshrl.u32 %v557, 7
    %v559 = vsub.s32 0, %v558
    %v560 = vrot.slane %v184, %v559
    %v673 = vunpack.c.l.b16 %v445
    %v674 = vunpack.c.l.b16 %v446
    %v675 = vunpack.c.l.b16 %v447
    %v676 = vunpack.c.l.b16 %v448
    %v677 = vunpack.c.l.b16 %v449
    %v678 = vunpack.c.l.b16 %v450
    %v679 = vunpack.c.l.b16 %v451
    %v680 = vunpack.c.l.b16 %v452
    %v681 = vunpack.c.l.b16 %v453
    %v682 = vunpack.c.l.b16 %v454
    %v683 = vunpack.c.l.b16 %v455
    %v684 = vunpack.c.l.b16 %v456
    %v685 = vunpack.c.l.b16 %v457
    %v686 = vunpack.c.l.b16 %v458
    %v687 = vunpack.c.l.b16 %v459
    %v688 = vunpack.c.l.b16 %v460
    %v689 = vunpack.c.l.b16 %v461
    %v690 = vunpack.c.l.b16 %v462
    %v691 = vunpack.c.l.b16 %v463
    %v692 = vunpack.c.l.b16 %v464
    %v693 = vunpack.c.l.b16 %v465
    %v694 = vunpack.c.l.b16 %v466
    %v695 = vunpack.c.l.b16 %v467
    %v696 = vunpack.c.l.b16 %v468
    %v697 = vunpack.c.l.b16 %v469
    %v698 = vunpack.c.l.b16 %v470
    %v699 = vunpack.c.l.b16 %v471
    %v700 = vunpack.c.l.b16 %v472
    %v701 = vunpack.c.l.b16 %v473
    %v702 = vunpack.c.l.b16 %v474
    %v703 = vunpack.c.l.b16 %v475
    %v704 = vunpack.c.l.b16 %v476
    %v705 = vunpack.c.l.b16 %v477
    %v706 = vunpack.c.l.b16 %v478
    %v707 = vunpack.c.l.b16 %v479
    %v708 = vunpack.c.l.b16 %v480
    %v709 = vunpack.c.l.b16 %v481
    %v710 = vunpack.c.l.b16 %v482
    %v711 = vunpack.c.l.b16 %v483
    %v712 = vunpack.c.l.b16 %v484
    %v713 = vunpack.c.l.b16 %v485
    %v714 = vunpack.c.l.b16 %v486
    %v715 = vunpack.c.l.b16 %v487
    %v716 = vunpack.c.l.b16 %v488
    %v717 = vunpack.c.l.b16 %v489
    %v718 = vunpack.c.l.b16 %v490
    %v719 = vunpack.c.l.b16 %v491
    %v720 = vunpack.c.l.b16 %v492
    %v721 = vunpack.c.l.b16 %v493
    %v722 = vunpack.c.l.b16 %v494
    %v723 = vunpack.c.l.b16 %v495
    %v724 = vunpack.c.l.b16 %v496
    %v725 = vunpack.c.l.b16 %v497
    %v726 = vunpack.c.l.b16 %v498
    %v727 = vunpack.c.l.b16 %v499
    %v728 = vunpack.c.l.b16 %v500
    %v729 = vunpack.c.l.b16 %v501
    %v730 = vunpack.c.l.b16 %v502
    %v731 = vunpack.c.l.b16 %v503
    %v732 = vunpack.c.l.b16 %v504
    %v733 = vunpack.c.l.b16 %v505
    %v734 = vunpack.c.l.b16 %v506
    %v735 = vunpack.c.l.b16 %v507
    %v736 = vunpack.c.l.b16 %v508
    %v737 = vunpack.c.l.b16 %v509
    %v738 = vunpack.c.l.b16 %v510
    %v739 = vunpack.c.l.b16 %v511
    %v740 = vunpack.c.l.b16 %v512
    %v741 = vunpack.c.l.b16 %v513
    %v742 = vunpack.c.l.b16 %v514
    %v743 = vunpack.c.l.b16 %v515
    %v744 = vunpack.c.l.b16 %v516
    %v745 = vunpack.c.l.b16 %v517
    %v746 = vunpack.c.l.b16 %v518
    %v747 = vunpack.c.l.b16 %v519
    %v748 = vunpack.c.l.b16 %v520
    %v749 = vunpack.c.l.b16 %v521
    %v750 = vunpack.c.l.b16 %v522
    %v751 = vunpack.c.l.b16 %v523
    %v752 = vunpack.c.l.b16 %v524
    %v753 = vunpack.c.l.b16 %v525
    %v754 = vunpack.c.l.b16 %v526
    %v755 = vunpack.c.l.b16 %v527
    %v756 = vunpack.c.l.b16 %v528
    %v757 = vunpack.c.l.b16 %v529
    %v758 = vunpack.c.l.b16 %v530
    %v759 = vunpack.c.l.b16 %v531
    %v760 = vunpack.c.l.b16 %v532
    %v761 = vunpack.c.l.b16 %v533
    %v762 = vunpack.c.l.b16 %v534
    %v763 = vunpack.c.l.b16 %v535
    %v764 = vunpack.c.l.b16 %v536
    %v765 = vunpack.c.l.b16 %v537
    %v766 = vunpack.c.l.b16 %v538
    %v767 = vunpack.c.l.b16 %v539
    %v768 = vunpack.c.l.b16 %v540
    %v769 = vunpack.c.l.b16 %v541
    %v770 = vunpack.c.l.b16 %v542
    %v771 = vunpack.c.l.b16 %v543
    %v772 = vunpack.c.l.b16 %v544
    %v773 = vunpack.c.l.b16 %v545
    %v774 = vunpack.c.l.b16 %v546
    %v775 = vunpack.c.l.b16 %v547
    %v776 = vunpack.c.l.b16 %v548
    %v777 = vunpack.c.l.b16 %v549
    %v778 = vunpack.c.l.b16 %v550
    %v779 = vunpack.c.l.b16 %v551
    %v780 = vunpack.c.l.b16 %v552
    %v781 = vunpack.c.l.b16 %v553
    %v782 = vunpack.c.l.b16 %v554
    %v783 = vunpack.c.l.b16 %v555
    %v784 = vunpack.c.l.b16 %v556
    %v785 = vpack.c.b16 %v674, %v673
    %v786 = vpack.c.b16 %v676, %v675
    %v787 = vpack.c.b16 %v678, %v677
    %v788 = vpack.c.b16 %v680, %v679
    %v789 = vpack.c.b16 %v682, %v681
    %v790 = vpack.c.b16 %v684, %v683
    %v791 = vpack.c.b16 %v686, %v685
    %v792 = vpack.c.b16 %v688, %v687
    %v793 = vpack.c.b16 %v690, %v689
    %v794 = vpack.c.b16 %v692, %v691
    %v795 = vpack.c.b16 %v694, %v693
    %v796 = vpack.c.b16 %v696, %v695
    %v797 = vpack.c.b16 %v698, %v697
    %v798 = vpack.c.b16 %v700, %v699
    %v799 = vpack.c.b16 %v702, %v701
    %v800 = vpack.c.b16 %v704, %v703
    %v801 = vpack.c.b16 %v706, %v705
    %v802 = vpack.c.b16 %v708, %v707
    %v803 = vpack.c.b16 %v710, %v709
    %v804 = vpack.c.b16 %v712, %v711
    %v805 = vpack.c.b16 %v714, %v713
    %v806 = vpack.c.b16 %v716, %v715
    %v807 = vpack.c.b16 %v718, %v717
    %v808 = vpack.c.b16 %v720, %v719
    %v809 = vpack.c.b16 %v722, %v721
    %v810 = vpack.c.b16 %v724, %v723
    %v811 = vpack.c.b16 %v726, %v725
    %v812 = vpack.c.b16 %v728, %v727
    %v813 = vpack.c.b16 %v730, %v729
    %v814 = vpack.c.b16 %v732, %v731
    %v815 = vpack.c.b16 %v734, %v733
    %v816 = vpack.c.b16 %v736, %v735
    %v817 = vpack.c.b16 %v738, %v737
    %v818 = vpack.c.b16 %v740, %v739
    %v819 = vpack.c.b16 %v742, %v741
    %v820 = vpack.c.b16 %v744, %v743
    %v821 = vpack.c.b16 %v746, %v745
    %v822 = vpack.c.b16 %v748, %v747
    %v823 = vpack.c.b16 %v750, %v749
    %v824 = vpack.c.b16 %v752, %v751
    %v825 = vpack.c.b16 %v754, %v753
    %v826 = vpack.c.b16 %v756, %v755
    %v827 = vpack.c.b16 %v758, %v757
    %v828 = vpack.c.b16 %v760, %v759
    %v829 = vpack.c.b16 %v762, %v761
    %v830 = vpack.c.b16 %v764, %v763
    %v831 = vpack.c.b16 %v766, %v765
    %v832 = vpack.c.b16 %v768, %v767
    %v833 = vpack.c.b16 %v770, %v769
    %v834 = vpack.c.b16 %v772, %v771
    %v835 = vpack.c.b16 %v774, %v773
    %v836 = vpack.c.b16 %v776, %v775
    %v837 = vpack.c.b16 %v778, %v777
    %v838 = vpack.c.b16 %v780, %v779
    %v839 = vpack.c.b16 %v782, %v781
    %v840 = vpack.c.b16 %v784, %v783
    %897 = vmatprep.subr.bf16.mxu0 0
    %898 = vmatpush1.bf16.msra.mxu0 %v785
    %899 = vmatprep.subr.bf16.mxu0 0
    %900 = vmatpush1.bf16.msra.mxu0 %v786
    %901 = vmatprep.subr.bf16.mxu0 0
    %902 = vmatpush1.bf16.msra.mxu0 %v787
    %903 = vmatprep.subr.bf16.mxu0 0
    %904 = vmatpush1.bf16.msra.mxu0 %v788
    %905 = vmatprep.subr.bf16.mxu0 0
    %906 = vmatpush1.bf16.msra.mxu0 %v789
    %907 = vmatprep.subr.bf16.mxu0 0
    %908 = vmatpush1.bf16.msra.mxu0 %v790
    %909 = vmatprep.subr.bf16.mxu0 0
    %910 = vmatpush1.bf16.msra.mxu0 %v791
    %911 = vmatprep.subr.bf16.mxu0 0
    %912 = vmatpush1.bf16.msra.mxu0 %v792
    %913 = vmatprep.subr.bf16.mxu0 0
    %914 = vmatpush1.bf16.msra.mxu0 %v793
    %915 = vmatprep.subr.bf16.mxu0 0
    %916 = vmatpush1.bf16.msra.mxu0 %v794
    %917 = vmatprep.subr.bf16.mxu0 0
    %918 = vmatpush1.bf16.msra.mxu0 %v795
    %919 = vmatprep.subr.bf16.mxu0 0
    %920 = vmatpush1.bf16.msra.mxu0 %v796
    %921 = vmatprep.subr.bf16.mxu0 0
    %922 = vmatpush1.bf16.msra.mxu0 %v797
    %923 = vmatprep.subr.bf16.mxu0 0
    %924 = vmatpush1.bf16.msra.mxu0 %v798
    %925 = vmatprep.subr.bf16.mxu0 0
    %926 = vmatpush1.bf16.msra.mxu0 %v799
    %927 = vmatprep.subr.bf16.mxu0 0
    %928 = vmatpush1.bf16.msra.mxu0 %v800
    %929 = vmatprep.mubr.bf16.mxu0 %v336
    %930 = vmatmul.mubr.bf16.gmra.mrb[0].mxu0 %v315
    %v931 = vpop.f32.mrb[0].mxu0
    %v932 = vadd.f32 %v560, %v931
    %v933 = vpop.f32.mrb[0].mxu0
    %v934 = vpop.f32.mrb[0].mxu0
    %v935 = vadd.f32 %v560, %v934
    %v936 = vpop.f32.mrb[0].mxu0
    %937 = vmatprep.mubr.bf16.mxu0 %v344
    %938 = vmatmul.mubr.bf16.gmra.mrb[0].mxu0 %v316
    %v939 = vpop.f32.mrb[0].mxu0
    %v940 = vadd.f32 %v560, %v939
    %v941 = vpop.f32.mrb[0].mxu0
    %v942 = vpop.f32.mrb[0].mxu0
    %v943 = vadd.f32 %v560, %v942
    %v944 = vpop.f32.mrb[0].mxu0
    %945 = vmatprep.mubr.bf16.mxu0 %v347
    %946 = vmatmul.mubr.bf16.gmra.mrb[0].mxu0 %v317
    %v947 = vpop.f32.mrb[0].mxu0
    %v948 = vadd.f32 %v560, %v947
    %v949 = vpop.f32.mrb[0].mxu0
    %v950 = vpop.f32.mrb[0].mxu0
    %v951 = vadd.f32 %v560, %v950
    %v952 = vpop.f32.mrb[0].mxu0
    %953 = vdwg.mxu0
    %954 = vmatprep.subr.bf16.mxu0 0
    %955 = vmatpush1.bf16.msra.mxu0 %v801
    %956 = vmatprep.subr.bf16.mxu0 0
    %957 = vmatpush1.bf16.msra.mxu0 %v802
    %958 = vmatprep.subr.bf16.mxu0 0
    %959 = vmatpush1.bf16.msra.mxu0 %v803
    %960 = vmatprep.subr.bf16.mxu0 0
    %961 = vmatpush1.bf16.msra.mxu0 %v804
    %962 = vmatprep.subr.bf16.mxu0 0
    %963 = vmatpush1.bf16.msra.mxu0 %v805
    %964 = vmatprep.subr.bf16.mxu0 0
    %965 = vmatpush1.bf16.msra.mxu0 %v806
    %966 = vmatprep.subr.bf16.mxu0 0
    %967 = vmatpush1.bf16.msra.mxu0 %v807
    %968 = vmatprep.subr.bf16.mxu0 0
    %969 = vmatpush1.bf16.msra.mxu0 %v808
    %970 = vmatprep.subr.bf16.mxu0 0
    %971 = vmatpush1.bf16.msra.mxu0 %v809
    %972 = vmatprep.subr.bf16.mxu0 0
    %973 = vmatpush1.bf16.msra.mxu0 %v810
    %974 = vmatprep.subr.bf16.mxu0 0
    %975 = vmatpush1.bf16.msra.mxu0 %v811
    %976 = vmatprep.subr.bf16.mxu0 0
    %977 = vmatpush1.bf16.msra.mxu0 %v812
    %978 = vmatprep.subr.bf16.mxu0 0
    %979 = vmatpush1.bf16.msra.mxu0 %v813
    %980 = vmatprep.subr.bf16.mxu0 0
    %981 = vmatpush1.bf16.msra.mxu0 %v814
    %982 = vmatprep.subr.bf16.mxu0 0
    %983 = vmatpush1.bf16.msra.mxu0 %v815
    %984 = vmatprep.subr.bf16.mxu0 0
    %985 = vmatpush1.bf16.msra.mxu0 %v816
    %986 = vmatprep.mubr.bf16.mxu0 %v378
    %987 = vmatmul.mubr.bf16.gmra.mrb[0].mxu0 %v357
    %v988 = vpop.f32.mrb[0].mxu0
    %v989 = vadd.f32 %v932, %v988
    %v990 = vpop.f32.mrb[0].mxu0
    %v991 = vpop.f32.mrb[0].mxu0
    %v992 = vadd.f32 %v935, %v991
    %v993 = vpop.f32.mrb[0].mxu0
    %994 = vmatprep.mubr.bf16.mxu0 %v387
    %995 = vmatmul.mubr.bf16.gmra.mrb[0].mxu0 %v359
    %v996 = vpop.f32.mrb[0].mxu0
    %v997 = vadd.f32 %v940, %v996
    %v998 = vpop.f32.mrb[0].mxu0
    %v999 = vpop.f32.mrb[0].mxu0
    %v1000 = vadd.f32 %v943, %v999
    %v1001 = vpop.f32.mrb[0].mxu0
    %1002 = vmatprep.mubr.bf16.mxu0 %v386
    %1003 = vmatmul.mubr.bf16.gmra.mrb[0].mxu0 %v358
    %v1004 = vpop.f32.mrb[0].mxu0
    %v1005 = vadd.f32 %v948, %v1004
    %v1006 = vpop.f32.mrb[0].mxu0
    %v1007 = vpop.f32.mrb[0].mxu0
    %v1008 = vadd.f32 %v951, %v1007
    %v1009 = vpop.f32.mrb[0].mxu0
    %1010 = vdwg.mxu0
    %1011 = vmatprep.subr.bf16.mxu0 0
    %1012 = vmatpush1.bf16.msra.mxu0 %v817
    %1013 = vmatprep.subr.bf16.mxu0 0
    %1014 = vmatpush1.bf16.msra.mxu0 %v818
    %1015 = vmatprep.subr.bf16.mxu0 0
    %1016 = vmatpush1.bf16.msra.mxu0 %v819
    %1017 = vmatprep.subr.bf16.mxu0 0
    %1018 = vmatpush1.bf16.msra.mxu0 %v820
    %1019 = vmatprep.subr.bf16.mxu0 0
    %1020 = vmatpush1.bf16.msra.mxu0 %v821
    %1021 = vmatprep.subr.bf16.mxu0 0
    %1022 = vmatpush1.bf16.msra.mxu0 %v822
    %1023 = vmatprep.subr.bf16.mxu0 0
    %1024 = vmatpush1.bf16.msra.mxu0 %v823
    %1025 = vmatprep.subr.bf16.mxu0 0
    %1026 = vmatpush1.bf16.msra.mxu0 %v824
    %1027 = vmatprep.subr.bf16.mxu0 0
    %1028 = vmatpush1.bf16.msra.mxu0 %v825
    %1029 = vmatprep.subr.bf16.mxu0 0
    %1030 = vmatpush1.bf16.msra.mxu0 %v826
    %1031 = vmatprep.subr.bf16.mxu0 0
    %1032 = vmatpush1.bf16.msra.mxu0 %v827
    %1033 = vmatprep.subr.bf16.mxu0 0
    %1034 = vmatpush1.bf16.msra.mxu0 %v828
    %1035 = vmatprep.subr.bf16.mxu0 0
    %1036 = vmatpush1.bf16.msra.mxu0 %v829
    %1037 = vmatprep.subr.bf16.mxu0 0
    %1038 = vmatpush1.bf16.msra.mxu0 %v830
    %1039 = vmatprep.subr.bf16.mxu0 0
    %1040 = vmatpush1.bf16.msra.mxu0 %v831
    %1041 = vmatprep.subr.bf16.mxu0 0
    %1042 = vmatpush1.bf16.msra.mxu0 %v832
    %1043 = vmatprep.mubr.bf16.mxu0 %v418
    %1044 = vmatmul.mubr.bf16.gmra.mrb[0].mxu0 %v397
    %v1045 = vpop.f32.mrb[0].mxu0
    %v1046 = vadd.f32 %v989, %v1045
    %v1047 = vpop.f32.mrb[0].mxu0
    %v1048 = vpop.f32.mrb[0].mxu0
    %v1049 = vadd.f32 %v992, %v1048
    %v1050 = vpop.f32.mrb[0].mxu0
    %1051 = vmatprep.mubr.bf16.mxu0 %v422
    %1052 = vmatmul.mubr.bf16.gmra.mrb[0].mxu0 %v399
    %v1053 = vpop.f32.mrb[0].mxu0
    %v1054 = vadd.f32 %v997, %v1053
    %v1055 = vpop.f32.mrb[0].mxu0
    %v1056 = vpop.f32.mrb[0].mxu0
    %v1057 = vadd.f32 %v1000, %v1056
    %v1058 = vpop.f32.mrb[0].mxu0
    %1059 = vmatprep.mubr.bf16.mxu0 %v427
    %1060 = vmatmul.mubr.bf16.gmra.mrb[0].mxu0 %v398
    %v1061 = vpop.f32.mrb[0].mxu0
    %v1062 = vadd.f32 %v1005, %v1061
    %v1063 = vpop.f32.mrb[0].mxu0
    %v1064 = vpop.f32.mrb[0].mxu0
    %v1065 = vadd.f32 %v1008, %v1064
    %v1066 = vpop.f32.mrb[0].mxu0
    %1067 = vdwg.mxu0
    %1068 = vmatprep.subr.bf16.mxu0 0
    %1069 = vmatpush1.bf16.msra.mxu0 %v833
    %1070 = vmatprep.subr.bf16.mxu0 0
    %1071 = vmatpush1.bf16.msra.mxu0 %v834
    %1072 = vmatprep.subr.bf16.mxu0 0
    %1073 = vmatpush1.bf16.msra.mxu0 %v835
    %1074 = vmatprep.subr.bf16.mxu0 0
    %1075 = vmatpush1.bf16.msra.mxu0 %v836
    %1076 = vmatprep.subr.bf16.mxu0 0
    %1077 = vmatpush1.bf16.msra.mxu0 %v837
    %1078 = vmatprep.subr.bf16.mxu0 0
    %1079 = vmatpush1.bf16.msra.mxu0 %v838
    %1080 = vmatprep.subr.bf16.mxu0 0
    %1081 = vmatpush1.bf16.msra.mxu0 %v839
    %1082 = vmatprep.subr.bf16.mxu0 0
    %1083 = vmatpush1.bf16.msra.mxu0 %v840
    %1084 = vmatprep.subr.bf16.mxu0 0
    %1085 = vmatpush1.bf16.msra.mxu0 0
    %1086 = vmatprep.subr.bf16.mxu0 0
    %1087 = vmatpush1.bf16.msra.mxu0 0
    %1088 = vmatprep.subr.bf16.mxu0 0
    %1089 = vmatpush1.bf16.msra.mxu0 0
    %1090 = vmatprep.subr.bf16.mxu0 0
    %1091 = vmatpush1.bf16.msra.mxu0 0
    %1092 = vmatprep.subr.bf16.mxu0 0
    %1093 = vmatpush1.bf16.msra.mxu0 0
    %1094 = vmatprep.subr.bf16.mxu0 0
    %1095 = vmatpush1.bf16.msra.mxu0 0
    %1096 = vmatprep.subr.bf16.mxu0 0
    %1097 = vmatpush1.bf16.msra.mxu0 0
    %1098 = vmatprep.subr.bf16.mxu0 0
    %1099 = vmatpush1.bf16.msra.mxu0 0
    %1100 = vmatprep.mubr.bf16.mxu0 0
    %1101 = vmatmul.mubr.bf16.gmra.mrb[0].mxu0 %v437
    %v1102 = vpop.f32.mrb[0].mxu0
    %v1103 = vadd.f32 %v1046, %v1102
    %v1104 = vpop.f32.mrb[0].mxu0
    %v1105 = vpop.f32.mrb[0].mxu0
    %v1106 = vadd.f32 %v1049, %v1105
    %v1107 = vpop.f32.mrb[0].mxu0
    %1108 = vmatprep.mubr.bf16.mxu0 0
    %1109 = vmatmul.mubr.bf16.gmra.mrb[0].mxu0 %v439
    %v1110 = vpop.f32.mrb[0].mxu0
    %v1111 = vadd.f32 %v1054, %v1110
    %v1112 = vpop.f32.mrb[0].mxu0
    %v1113 = vpop.f32.mrb[0].mxu0
    %v1114 = vadd.f32 %v1057, %v1113
    %v1115 = vpop.f32.mrb[0].mxu0
    %1116 = vmatprep.mubr.bf16.mxu0 0
    %1117 = vmatmul.mubr.bf16.gmra.mrb[0].mxu0 %v441
    %v1118 = vpop.f32.mrb[0].mxu0
    %v1119 = vadd.f32 %v1062, %v1118
    %v1120 = vpop.f32.mrb[0].mxu0
    %v1121 = vpop.f32.mrb[0].mxu0
    %v1122 = vadd.f32 %v1065, %v1121
    %v1123 = vpop.f32.mrb[0].mxu0
    %1124 = vdwg.mxu0
    %v1125 = vsel %vm178, %v1103, 0.0
    %v1126 = vsel %vm179, %v1106, 0.0
    %v1127 = vsel %vm180, %v1111, 0.0
    %v1128 = vsel %vm181, %v1114, 0.0
    %v1129 = vsel %vm182, %v1119, 0.0
    %v1130 = vsel %vm183, %v1122, 0.0
    %v1131 = vadd.f32 %v1125, %v1126
    %v1132 = vadd.f32 %v1131, %v1127
    %v1133 = vadd.f32 %v1132, %v1128
    %v1134 = vadd.f32 %v1133, %v1129
    %vm1135 = vcmask 1043456
    %v1136 = vsel %vm1135, %v1130, 0.0
    %v1137 = vadd.f32 %v1134, %v1136
    %v1138 = vrot.slane %v1137, 4
    %v1139 = vadd.f32 %v1137, %v1138
    %v1140 = vrot.slane %v1139, 2
    %v1141 = vadd.f32 %v1139, %v1140
    %v1142 = vrot.slane %v1141, 1
    %v1143 = vadd.f32 %v1141, %v1142
    %v1144 = vmul.f32 %v1143, 0.03125
    %v1145 = vsub.f32 %v1103, %v1144
    %v1146 = vsub.f32 %v1106, %v1144
    %v1147 = vsub.f32 %v1111, %v1144
    %v1148 = vsub.f32 %v1114, %v1144
    %v1149 = vsub.f32 %v1119, %v1144
    %v1150 = vsub.f32 %v1122, %v1144
    %v1151 = vsel %vm178, %v1145, 0.0
    %v1152 = vsel %vm179, %v1146, 0.0
    %v1153 = vsel %vm180, %v1147, 0.0
    %v1154 = vsel %vm181, %v1148, 0.0
    %v1155 = vsel %vm182, %v1149, 0.0
    %v1156 = vsel %vm183, %v1150, 0.0
    %v1157 = vmul.f32 %v1151, %v1151
    %v1158 = vmul.f32 %v1152, %v1152
    %v1159 = vmul.f32 %v1153, %v1153
    %v1160 = vmul.f32 %v1154, %v1154
    %v1161 = vmul.f32 %v1155, %v1155
    %v1162 = vmul.f32 %v1156, %v1156
    %v1163 = vadd.f32 %v1157, %v1158
    %v1164 = vadd.f32 %v1163, %v1159
    %v1165 = vadd.f32 %v1164, %v1160
    %v1166 = vadd.f32 %v1165, %v1161
    %v1167 = vsel %vm1135, %v1162, 0.0
    %v1168 = vadd.f32 %v1166, %v1167
    %v1169 = vrot.slane %v1168, 4
    %v1170 = vadd.f32 %v1168, %v1169
    %v1171 = vrot.slane %v1170, 2
    %v1172 = vadd.f32 %v1170, %v1171
    %v1173 = vrot.slane %v1172, 1
    %v1174 = vadd.f32 %v1172, %v1173
    %v1175 = vmul.f32 %v1174, 0.03125
    %v1176 = vadd.f32 %v1175, 1e-05
    %v1177 = vrsqrt.pop %v1176
    %v1178 = vmul.f32 %v185, %v1177
    %v1179 = vlaneseq
    %v1180 = vshrl.u32 %v1179, 7
    %v1181 = vsub.s32 0, %v1180
    %v1182 = vrot.slane %v1178, %v1181
    %v1183 = vmul.f32 %v1145, %v1182
    %v1184 = vmul.f32 %v1146, %v1182
    %v1185 = vmul.f32 %v1147, %v1182
    %v1186 = vmul.f32 %v1148, %v1182
    %v1187 = vmul.f32 %v1149, %v1182
    %v1188 = vmul.f32 %v1150, %v1182
    %v1189 = vlaneseq
    %v1190 = vshrl.u32 %v1189, 7
    %v1191 = vsub.s32 0, %v1190
    %v1192 = vrot.slane %v186, %v1191
    %v1193 = vadd.f32 %v1183, %v1192
    %v1194 = vadd.f32 %v1184, %v1192
    %v1195 = vadd.f32 %v1185, %v1192
    %v1196 = vadd.f32 %v1186, %v1192
    %v1197 = vadd.f32 %v1187, %v1192
    %v1198 = vadd.f32 %v1188, %v1192
    %vm1199 = vcmp.ge.f32.partialorder %v1193, 0.0
    %vm1200 = vcmp.ge.f32.partialorder %v1194, 0.0
    %vm1201 = vcmp.ge.f32.partialorder %v1195, 0.0
    %vm1202 = vcmp.ge.f32.partialorder %v1196, 0.0
    %vm1203 = vcmp.ge.f32.partialorder %v1197, 0.0
    %vm1204 = vcmp.ge.f32.partialorder %v1198, 0.0
    %v1205 = vmul.f32 %v1193, 0.2
    %v1206 = vmul.f32 %v1194, 0.2
    %v1207 = vmul.f32 %v1195, 0.2
    %v1208 = vmul.f32 %v1196, 0.2
    %v1209 = vmul.f32 %v1197, 0.2
    %v1210 = vmul.f32 %v1198, 0.2
    %v1211 = vsel %vm1199, %v1193, %v1205
    %v1212 = vsel %vm1200, %v1194, %v1206
    %v1213 = vsel %vm1201, %v1195, %v1207
    %v1214 = vsel %vm1202, %v1196, %v1208
    %v1215 = vsel %vm1203, %v1197, %v1209
    %v1216 = vsel %vm1204, %v1198, %v1210
    %v1217 = vld [vmem:[#allocation3] sm:$0x3]
    %v1218 = vsel %vm192, 0, %v1217
    %1219 = vst [vmem:[#allocation3] sm:$0x3] %v1218
    %v1220 = vld [vmem:[#allocation3 + $0x14] sm:$0x8]
    %v1221 = vsel %vm198, 0, %v1220
    %1222 = vst [vmem:[#allocation3 + $0x14] sm:$0x8] %v1221
    %1223 = vst [vmem:[#allocation3 + $0x18] sm:$0x1] 0
    %v1224 = vsel %vm178, %v1211, 0.0
    %v1225 = vsel %vm179, %v1212, 0.0
    %v1226 = vsel %vm180, %v1213, 0.0
    %v1227 = vsel %vm181, %v1214, 0.0
    %v1228 = vsel %vm182, %v1215, 0.0
    %v1229 = vsel %vm183, %v1216, 0.0
    %v1230 = vpack.c.bf16 %v1225, %v1224
    %v1231 = vpack.c.bf16 %v1227, %v1226
    %v1232 = vpack.c.bf16 %v1229, %v1228
    %v1236 = vunpack.c.l.b16 %v1230
    %v1237 = vunpack.c.h.b16 %v1230
    %v1238 = vunpack.c.l.b16 %v1231
    %v1239 = vunpack.c.h.b16 %v1231
    %v1240 = vunpack.c.l.b16 %v1232
    %v1241 = vunpack.c.h.b16 %v1232
    %v1242 = vpack.c.b16 %v1236, %v1236
    %v1243 = vpack.c.b16 %v1237, %v1237
    %v1244 = vpack.c.b16 %v1238, %v1238
    %v1245 = vpack.c.b16 %v1239, %v1239
    %v1246 = vpack.c.b16 %v1240, %v1240
    %v1247 = vpack.c.b16 %v1241, %v1241
    %v1249 = vshrl.u32 %v1242, 16
    %v1251 = vrot.slane %v1249, 6
    %v1252 = vshll.u32 %v1242, 16
    %v1254 = vrot.slane %v1252, 7
    %v1255 = vor.u32 %v1251, %v1254
    %v1256 = vrot.slane %v1255, 4
    %v1258 = vshrl.u32 %v1243, 16
    %v1260 = vrot.slane %v1258, 6
    %v1261 = vshll.u32 %v1243, 16
    %v1263 = vrot.slane %v1261, 7
    %v1264 = vor.u32 %v1260, %v1263
    %v1265 = vsel %vm210, %v1256, %v1264
    %v1266 = vrot.slane %v1264, 4
    %v1268 = vshrl.u32 %v1244, 16
    %v1270 = vrot.slane %v1268, 6
    %v1271 = vshll.u32 %v1244, 16
    %v1273 = vrot.slane %v1271, 7
    %v1274 = vor.u32 %v1270, %v1273
    %v1275 = vsel %vm210, %v1266, %v1274
    %v1276 = vrot.slane %v1274, 4
    %v1278 = vshrl.u32 %v1245, 16
    %v1280 = vrot.slane %v1278, 6
    %v1281 = vshll.u32 %v1245, 16
    %v1283 = vrot.slane %v1281, 7
    %v1284 = vor.u32 %v1280, %v1283
    %v1285 = vsel %vm210, %v1276, %v1284
    %v1286 = vrot.slane %v1284, 4
    %v1288 = vshrl.u32 %v1246, 16
    %v1290 = vrot.slane %v1288, 6
    %v1291 = vshll.u32 %v1246, 16
    %v1293 = vrot.slane %v1291, 7
    %v1294 = vor.u32 %v1290, %v1293
    %v1295 = vsel %vm210, %v1286, %v1294
    %v1296 = vrot.slane %v1294, 4
    %v1298 = vshrl.u32 %v1247, 16
    %v1300 = vrot.slane %v1298, 6
    %v1301 = vshll.u32 %v1247, 16
    %v1303 = vrot.slane %v1301, 7
    %v1304 = vor.u32 %v1300, %v1303
    %v1305 = vsel %vm210, %v1296, %v1304
    %v1312 = vld [vmem:[#allocation3] sm:$0xe]
    %v1313 = vsel %vm277, %v1255, %v1312
    %1314 = vst [vmem:[#allocation3] sm:$0xe] %v1313
    %1315 = vst [vmem:[#allocation3 + $0x4] sm:$0xf] %v1265
    %1316 = vst [vmem:[#allocation3 + $0x8] sm:$0xf] %v1275
    %1317 = vst [vmem:[#allocation3 + $0xc] sm:$0xf] %v1285
    %1318 = vst [vmem:[#allocation3 + $0x10] sm:$0xf] %v1295
    %v1319 = vld [vmem:[#allocation3 + $0x14] sm:$0xf]
    %v1320 = vsel %vm287, %v1305, %v1319
    %1321 = vst [vmem:[#allocation3 + $0x14] sm:$0xf] %v1320
    %v1322 = vld [vmem:[#allocation3] sm:$0xf]
    %v1323 = vld [vmem:[#allocation3 + $0x4] sm:$0xf]
    %v1324 = vld [vmem:[#allocation3 + $0x8] sm:$0xf]
    %v1325 = vld [vmem:[#allocation3 + $0xc] sm:$0xf]
    %v1326 = vld [vmem:[#allocation3 + $0x10] sm:$0xf]
    %v1327 = vld [vmem:[#allocation3 + $0x14] sm:$0x3]
    %v1328 = vld [vmem:[#allocation3 + $0x14] sm:$0x7]
    %v1329 = vld [vmem:[#allocation3] sm:$0xe]
    %v1330 = vld [vmem:[#allocation3 + $0x14] sm:$0xf]
    %v1331 = vld [vmem:[#allocation3] sm:$0xc]
    %v1332 = vld [vmem:[#allocation3 + $0x18] sm:$0x1]
    %v1333 = vld [vmem:[#allocation3] sm:$0x8]
    %v1340 = vunpack.c.l.b16 %v1322
    %v1341 = vunpack.c.l.b16 %v1323
    %v1342 = vunpack.c.l.b16 %v1324
    %v1343 = vunpack.c.l.b16 %v1325
    %v1344 = vunpack.c.l.b16 %v1326
    %v1345 = vunpack.c.l.b16 %v1327
    %v1346 = vpack.c.b16 %v1341, %v1340
    %v1347 = vpack.c.b16 %v1343, %v1342
    %v1348 = vpack.c.b16 %v1345, %v1344
    %v1353 = vunpack.c.l.b16 %v1328
    %v1354 = vpack.c.b16 %v1353, %v1344
    %v1356 = vshrl.u32 %v1346, 16
    %v1358 = vshll.u32 %v1346, 16
    %v1360 = vrot.slane %v1358, 1
    %v1361 = vor.u32 %v1356, %v1360
    %v1363 = vshll.u32 %v1347, 16
    %v1365 = vrot.slane %v1363, 1
    %v1366 = vsel %vm324, %v1361, %v1365
    %v1367 = vshrl.u32 %v1347, 16
    %v1369 = vor.u32 %v1367, %v1365
    %v1371 = vshll.u32 %v1354, 16
    %v1373 = vrot.slane %v1371, 1
    %v1374 = vsel %vm324, %v1369, %v1373
    %v1375 = vshrl.u32 %v1354, 16
    %v1377 = vor.u32 %v1375, %v1373
    %v1382 = vunpack.c.l.b16 %v1329
    %v1383 = vpack.c.b16 %v1341, %v1382
    %v1384 = vrot.slane %v1383, 1
    %v1385 = vrot.slane %v1347, 1
    %v1386 = vsel %vm354, %v1384, %v1385
    %v1387 = vrot.slane %v1354, 1
    %v1388 = vsel %vm354, %v1385, %v1387
    %v1393 = vunpack.c.l.b16 %v1330
    %v1394 = vpack.c.b16 %v1393, %v1344
    %v1396 = vshrl.u32 %v1383, 16
    %v1398 = vrot.slane %v1396, 1
    %v1399 = vshll.u32 %v1383, 16
    %v1401 = vrot.slane %v1399, 2
    %v1402 = vor.u32 %v1398, %v1401
    %v1403 = vrot.slane %v1367, 1
    %v1404 = vrot.slane %v1363, 2
    %v1405 = vor.u32 %v1403, %v1404
    %v1406 = vsel %vm366, %v1402, %v1405
    %v1408 = vshrl.u32 %v1394, 16
    %v1410 = vrot.slane %v1408, 1
    %v1411 = vshll.u32 %v1394, 16
    %v1413 = vrot.slane %v1411, 2
    %v1414 = vor.u32 %v1410, %v1413
    %v1415 = vsel %vm366, %v1405, %v1414
    %v1420 = vunpack.c.l.b16 %v1331
    %v1421 = vpack.c.b16 %v1341, %v1420
    %v1422 = vrot.slane %v1421, 2
    %v1423 = vrot.slane %v1347, 2
    %v1424 = vsel %vm394, %v1422, %v1423
    %v1425 = vrot.slane %v1394, 2
    %v1426 = vsel %vm394, %v1423, %v1425
    %v1431 = vunpack.c.l.b16 %v1332
    %v1432 = vpack.c.b16 %v1431, %v1431
    %v1434 = vshrl.u32 %v1421, 16
    %v1436 = vrot.slane %v1434, 2
    %v1437 = vshll.u32 %v1421, 16
    %v1439 = vrot.slane %v1437, 3
    %v1440 = vor.u32 %v1436, %v1439
    %v1441 = vrot.slane %v1367, 2
    %v1442 = vrot.slane %v1363, 3
    %v1443 = vor.u32 %v1441, %v1442
    %v1444 = vsel %vm406, %v1440, %v1443
    %v1445 = vrot.slane %v1408, 2
    %v1446 = vrot.slane %v1411, 3
    %v1447 = vor.u32 %v1445, %v1446
    %v1448 = vsel %vm406, %v1443, %v1447
    %v1450 = vshll.u32 %v1432, 16
    %v1452 = vrot.slane %v1450, 3
    %v1453 = vsel %vm406, %v1447, %v1452
    %v1458 = vunpack.c.l.b16 %v1333
    %v1459 = vpack.c.b16 %v1341, %v1458
    %v1460 = vrot.slane %v1459, 3
    %v1461 = vrot.slane %v1347, 3
    %v1462 = vsel %vm434, %v1460, %v1461
    %v1463 = vrot.slane %v1394, 3
    %v1464 = vsel %vm434, %v1461, %v1463
    %v1465 = vrot.slane %v1432, 3
    %v1466 = vsel %vm434, %v1463, %v1465
    %v1470 = vld [vmem:[#allocation9] sm:$0xf]
    %v1471 = vld [vmem:[#allocation9 + $0x4] sm:$0xf]
    %v1472 = vld [vmem:[#allocation9 + $0x8] sm:$0xf]
    %v1473 = vld [vmem:[#allocation9 + $0xc] sm:$0xf]
    %v1474 = vld [vmem:[#allocation9 + $0x10] sm:$0xf]
    %v1475 = vld [vmem:[#allocation9 + $0x14] sm:$0xf]
    %v1476 = vld [vmem:[#allocation9 + $0x18] sm:$0xf]
    %v1477 = vld [vmem:[#allocation9 + $0x1c] sm:$0xf]
    %v1478 = vld [vmem:[#allocation9 + $0x20] sm:$0xf]
    %v1479 = vld [vmem:[#allocation9 + $0x24] sm:$0xf]
    %v1480 = vld [vmem:[#allocation9 + $0x28] sm:$0xf]
    %v1481 = vld [vmem:[#allocation9 + $0x2c] sm:$0xf]
    %v1482 = vld [vmem:[#allocation9 + $0x30] sm:$0xf]
    %v1483 = vld [vmem:[#allocation9 + $0x34] sm:$0xf]
    %v1484 = vld [vmem:[#allocation9 + $0x38] sm:$0xf]
    %v1485 = vld [vmem:[#allocation9 + $0x3c] sm:$0xf]
    %v1486 = vld [vmem:[#allocation9 + $0x40] sm:$0xf]
    %v1487 = vld [vmem:[#allocation9 + $0x44] sm:$0xf]
    %v1488 = vld [vmem:[#allocation9 + $0x48] sm:$0xf]
    %v1489 = vld [vmem:[#allocation9 + $0x4c] sm:$0xf]
    %v1490 = vld [vmem:[#allocation9 + $0x50] sm:$0xf]
    %v1491 = vld [vmem:[#allocation9 + $0x54] sm:$0xf]
    %v1492 = vld [vmem:[#allocation9 + $0x58] sm:$0xf]
    %v1493 = vld [vmem:[#allocation9 + $0x5c] sm:$0xf]
    %v1494 = vld [vmem:[#allocation9 + $0x60] sm:$0xf]
    %v1495 = vld [vmem:[#allocation9 + $0x64] sm:$0xf]
    %v1496 = vld [vmem:[#allocation9 + $0x68] sm:$0xf]
    %v1497 = vld [vmem:[#allocation9 + $0x6c] sm:$0xf]
    %v1498 = vld [vmem:[#allocation9 + $0x70] sm:$0xf]
    %v1499 = vld [vmem:[#allocation9 + $0x74] sm:$0xf]
    %v1500 = vld [vmem:[#allocation9 + $0x78] sm:$0xf]
    %v1501 = vld [vmem:[#allocation9 + $0x7c] sm:$0xf]
    %v1502 = vld [vmem:[#allocation9 + $0x80] sm:$0xf]
    %v1503 = vld [vmem:[#allocation9 + $0x84] sm:$0xf]
    %v1504 = vld [vmem:[#allocation9 + $0x88] sm:$0xf]
    %v1505 = vld [vmem:[#allocation9 + $0x8c] sm:$0xf]
    %v1506 = vld [vmem:[#allocation9 + $0x90] sm:$0xf]
    %v1507 = vld [vmem:[#allocation9 + $0x94] sm:$0xf]
    %v1508 = vld [vmem:[#allocation9 + $0x98] sm:$0xf]
    %v1509 = vld [vmem:[#allocation9 + $0x9c] sm:$0xf]
    %v1510 = vld [vmem:[#allocation9 + $0xa0] sm:$0xf]
    %v1511 = vld [vmem:[#allocation9 + $0xa4] sm:$0xf]
    %v1512 = vld [vmem:[#allocation9 + $0xa8] sm:$0xf]
    %v1513 = vld [vmem:[#allocation9 + $0xac] sm:$0xf]
    %v1514 = vld [vmem:[#allocation9 + $0xb0] sm:$0xf]
    %v1515 = vld [vmem:[#allocation9 + $0xb4] sm:$0xf]
    %v1516 = vld [vmem:[#allocation9 + $0xb8] sm:$0xf]
    %v1517 = vld [vmem:[#allocation9 + $0xbc] sm:$0xf]
    %v1518 = vld [vmem:[#allocation9 + $0xc0] sm:$0xf]
    %v1519 = vld [vmem:[#allocation9 + $0xc4] sm:$0xf]
    %v1520 = vld [vmem:[#allocation9 + $0xc8] sm:$0xf]
    %v1521 = vld [vmem:[#allocation9 + $0xcc] sm:$0xf]
    %v1522 = vld [vmem:[#allocation9 + $0xd0] sm:$0xf]
    %v1523 = vld [vmem:[#allocation9 + $0xd4] sm:$0xf]
    %v1524 = vld [vmem:[#allocation9 + $0xd8] sm:$0xf]
    %v1525 = vld [vmem:[#allocation9 + $0xdc] sm:$0xf]
    %v1526 = vld [vmem:[#allocation9 + $0xe0] sm:$0xf]
    %v1527 = vld [vmem:[#allocation9 + $0xe4] sm:$0xf]
    %v1528 = vld [vmem:[#allocation9 + $0xe8] sm:$0xf]
    %v1529 = vld [vmem:[#allocation9 + $0xec] sm:$0xf]
    %v1530 = vld [vmem:[#allocation9 + $0xf0] sm:$0xf]
    %v1531 = vld [vmem:[#allocation9 + $0xf4] sm:$0xf]
    %v1532 = vld [vmem:[#allocation9 + $0xf8] sm:$0xf]
    %v1533 = vld [vmem:[#allocation9 + $0xfc] sm:$0xf]
    %v1534 = vld [vmem:[#allocation9 + $0x100] sm:$0xf]
    %v1535 = vld [vmem:[#allocation9 + $0x104] sm:$0xf]
    %v1536 = vld [vmem:[#allocation9 + $0x108] sm:$0xf]
    %v1537 = vld [vmem:[#allocation9 + $0x10c] sm:$0xf]
    %v1538 = vld [vmem:[#allocation9 + $0x110] sm:$0xf]
    %v1539 = vld [vmem:[#allocation9 + $0x114] sm:$0xf]
    %v1540 = vld [vmem:[#allocation9 + $0x118] sm:$0xf]
    %v1541 = vld [vmem:[#allocation9 + $0x11c] sm:$0xf]
    %v1542 = vld [vmem:[#allocation9 + $0x120] sm:$0xf]
    %v1543 = vld [vmem:[#allocation9 + $0x124] sm:$0xf]
    %v1544 = vld [vmem:[#allocation9 + $0x128] sm:$0xf]
    %v1545 = vld [vmem:[#allocation9 + $0x12c] sm:$0xf]
    %v1546 = vld [vmem:[#allocation9 + $0x130] sm:$0xf]
    %v1547 = vld [vmem:[#allocation9 + $0x134] sm:$0xf]
    %v1548 = vld [vmem:[#allocation9 + $0x138] sm:$0xf]
    %v1549 = vld [vmem:[#allocation9 + $0x13c] sm:$0xf]
    %v1550 = vld [vmem:[#allocation9 + $0x140] sm:$0xf]
    %v1551 = vld [vmem:[#allocation9 + $0x144] sm:$0xf]
    %v1552 = vld [vmem:[#allocation9 + $0x148] sm:$0xf]
    %v1553 = vld [vmem:[#allocation9 + $0x14c] sm:$0xf]
    %v1554 = vld [vmem:[#allocation9 + $0x150] sm:$0xf]
    %v1555 = vld [vmem:[#allocation9 + $0x154] sm:$0xf]
    %v1556 = vld [vmem:[#allocation9 + $0x158] sm:$0xf]
    %v1557 = vld [vmem:[#allocation9 + $0x15c] sm:$0xf]
    %v1558 = vld [vmem:[#allocation9 + $0x160] sm:$0xf]
    %v1559 = vld [vmem:[#allocation9 + $0x164] sm:$0xf]
    %v1560 = vld [vmem:[#allocation9 + $0x168] sm:$0xf]
    %v1561 = vld [vmem:[#allocation9 + $0x16c] sm:$0xf]
    %v1562 = vld [vmem:[#allocation9 + $0x170] sm:$0xf]
    %v1563 = vld [vmem:[#allocation9 + $0x174] sm:$0xf]
    %v1564 = vld [vmem:[#allocation9 + $0x178] sm:$0xf]
    %v1565 = vld [vmem:[#allocation9 + $0x17c] sm:$0xf]
    %v1566 = vld [vmem:[#allocation9 + $0x180] sm:$0xf]
    %v1567 = vld [vmem:[#allocation9 + $0x184] sm:$0xf]
    %v1568 = vld [vmem:[#allocation9 + $0x188] sm:$0xf]
    %v1569 = vld [vmem:[#allocation9 + $0x18c] sm:$0xf]
    %v1570 = vld [vmem:[#allocation9 + $0x190] sm:$0xf]
    %v1571 = vld [vmem:[#allocation9 + $0x194] sm:$0xf]
    %v1572 = vld [vmem:[#allocation9 + $0x198] sm:$0xf]
    %v1573 = vld [vmem:[#allocation9 + $0x19c] sm:$0xf]
    %v1574 = vld [vmem:[#allocation9 + $0x1a0] sm:$0xf]
    %v1575 = vld [vmem:[#allocation9 + $0x1a4] sm:$0xf]
    %v1576 = vld [vmem:[#allocation9 + $0x1a8] sm:$0xf]
    %v1577 = vld [vmem:[#allocation9 + $0x1ac] sm:$0xf]
    %v1578 = vld [vmem:[#allocation9 + $0x1b0] sm:$0xf]
    %v1579 = vld [vmem:[#allocation9 + $0x1b4] sm:$0xf]
    %v1580 = vld [vmem:[#allocation9 + $0x1b8] sm:$0xf]
    %v1581 = vld [vmem:[#allocation9 + $0x1bc] sm:$0xf]
    %v1582 = vlaneseq
    %v1583 = vshrl.u32 %v1582, 7
    %v1584 = vsub.s32 0, %v1583
    %v1585 = vrot.slane %v187, %v1584
    %v1698 = vunpack.c.l.b16 %v1470
    %v1699 = vunpack.c.l.b16 %v1471
    %v1700 = vunpack.c.l.b16 %v1472
    %v1701 = vunpack.c.l.b16 %v1473
    %v1702 = vunpack.c.l.b16 %v1474
    %v1703 = vunpack.c.l.b16 %v1475
    %v1704 = vunpack.c.l.b16 %v1476
    %v1705 = vunpack.c.l.b16 %v1477
    %v1706 = vunpack.c.l.b16 %v1478
    %v1707 = vunpack.c.l.b16 %v1479
    %v1708 = vunpack.c.l.b16 %v1480
    %v1709 = vunpack.c.l.b16 %v1481
    %v1710 = vunpack.c.l.b16 %v1482
    %v1711 = vunpack.c.l.b16 %v1483
    %v1712 = vunpack.c.l.b16 %v1484
    %v1713 = vunpack.c.l.b16 %v1485
    %v1714 = vunpack.c.l.b16 %v1486
    %v1715 = vunpack.c.l.b16 %v1487
    %v1716 = vunpack.c.l.b16 %v1488
    %v1717 = vunpack.c.l.b16 %v1489
    %v1718 = vunpack.c.l.b16 %v1490
    %v1719 = vunpack.c.l.b16 %v1491
    %v1720 = vunpack.c.l.b16 %v1492
    %v1721 = vunpack.c.l.b16 %v1493
    %v1722 = vunpack.c.l.b16 %v1494
    %v1723 = vunpack.c.l.b16 %v1495
    %v1724 = vunpack.c.l.b16 %v1496
    %v1725 = vunpack.c.l.b16 %v1497
    %v1726 = vunpack.c.l.b16 %v1498
    %v1727 = vunpack.c.l.b16 %v1499
    %v1728 = vunpack.c.l.b16 %v1500
    %v1729 = vunpack.c.l.b16 %v1501
    %v1730 = vunpack.c.l.b16 %v1502
    %v1731 = vunpack.c.l.b16 %v1503
    %v1732 = vunpack.c.l.b16 %v1504
    %v1733 = vunpack.c.l.b16 %v1505
    %v1734 = vunpack.c.l.b16 %v1506
    %v1735 = vunpack.c.l.b16 %v1507
    %v1736 = vunpack.c.l.b16 %v1508
    %v1737 = vunpack.c.l.b16 %v1509
    %v1738 = vunpack.c.l.b16 %v1510
    %v1739 = vunpack.c.l.b16 %v1511
    %v1740 = vunpack.c.l.b16 %v1512
    %v1741 = vunpack.c.l.b16 %v1513
    %v1742 = vunpack.c.l.b16 %v1514
    %v1743 = vunpack.c.l.b16 %v1515
    %v1744 = vunpack.c.l.b16 %v1516
    %v1745 = vunpack.c.l.b16 %v1517
    %v1746 = vunpack.c.l.b16 %v1518
    %v1747 = vunpack.c.l.b16 %v1519
    %v1748 = vunpack.c.l.b16 %v1520
    %v1749 = vunpack.c.l.b16 %v1521
    %v1750 = vunpack.c.l.b16 %v1522
    %v1751 = vunpack.c.l.b16 %v1523
    %v1752 = vunpack.c.l.b16 %v1524
    %v1753 = vunpack.c.l.b16 %v1525
    %v1754 = vunpack.c.l.b16 %v1526
    %v1755 = vunpack.c.l.b16 %v1527
    %v1756 = vunpack.c.l.b16 %v1528
    %v1757 = vunpack.c.l.b16 %v1529
    %v1758 = vunpack.c.l.b16 %v1530
    %v1759 = vunpack.c.l.b16 %v1531
    %v1760 = vunpack.c.l.b16 %v1532
    %v1761 = vunpack.c.l.b16 %v1533
    %v1762 = vunpack.c.l.b16 %v1534
    %v1763 = vunpack.c.l.b16 %v1535
    %v1764 = vunpack.c.l.b16 %v1536
    %v1765 = vunpack.c.l.b16 %v1537
    %v1766 = vunpack.c.l.b16 %v1538
    %v1767 = vunpack.c.l.b16 %v1539
    %v1768 = vunpack.c.l.b16 %v1540
    %v1769 = vunpack.c.l.b16 %v1541
    %v1770 = vunpack.c.l.b16 %v1542
    %v1771 = vunpack.c.l.b16 %v1543
    %v1772 = vunpack.c.l.b16 %v1544
    %v1773 = vunpack.c.l.b16 %v1545
    %v1774 = vunpack.c.l.b16 %v1546
    %v1775 = vunpack.c.l.b16 %v1547
    %v1776 = vunpack.c.l.b16 %v1548
    %v1777 = vunpack.c.l.b16 %v1549
    %v1778 = vunpack.c.l.b16 %v1550
    %v1779 = vunpack.c.l.b16 %v1551
    %v1780 = vunpack.c.l.b16 %v1552
    %v1781 = vunpack.c.l.b16 %v1553
    %v1782 = vunpack.c.l.b16 %v1554
    %v1783 = vunpack.c.l.b16 %v1555
    %v1784 = vunpack.c.l.b16 %v1556
    %v1785 = vunpack.c.l.b16 %v1557
    %v1786 = vunpack.c.l.b16 %v1558
    %v1787 = vunpack.c.l.b16 %v1559
    %v1788 = vunpack.c.l.b16 %v1560
    %v1789 = vunpack.c.l.b16 %v1561
    %v1790 = vunpack.c.l.b16 %v1562
    %v1791 = vunpack.c.l.b16 %v1563
    %v1792 = vunpack.c.l.b16 %v1564
    %v1793 = vunpack.c.l.b16 %v1565
    %v1794 = vunpack.c.l.b16 %v1566
    %v1795 = vunpack.c.l.b16 %v1567
    %v1796 = vunpack.c.l.b16 %v1568
    %v1797 = vunpack.c.l.b16 %v1569
    %v1798 = vunpack.c.l.b16 %v1570
    %v1799 = vunpack.c.l.b16 %v1571
    %v1800 = vunpack.c.l.b16 %v1572
    %v1801 = vunpack.c.l.b16 %v1573
    %v1802 = vunpack.c.l.b16 %v1574
    %v1803 = vunpack.c.l.b16 %v1575
    %v1804 = vunpack.c.l.b16 %v1576
    %v1805 = vunpack.c.l.b16 %v1577
    %v1806 = vunpack.c.l.b16 %v1578
    %v1807 = vunpack.c.l.b16 %v1579
    %v1808 = vunpack.c.l.b16 %v1580
    %v1809 = vunpack.c.l.b16 %v1581
    %v1810 = vpack.c.b16 %v1699, %v1698
    %v1811 = vpack.c.b16 %v1701, %v1700
    %v1812 = vpack.c.b16 %v1703, %v1702
    %v1813 = vpack.c.b16 %v1705, %v1704
    %v1814 = vpack.c.b16 %v1707, %v1706
    %v1815 = vpack.c.b16 %v1709, %v1708
    %v1816 = vpack.c.b16 %v1711, %v1710
    %v1817 = vpack.c.b16 %v1713, %v1712
    %v1818 = vpack.c.b16 %v1715, %v1714
    %v1819 = vpack.c.b16 %v1717, %v1716
    %v1820 = vpack.c.b16 %v1719, %v1718
    %v1821 = vpack.c.b16 %v1721, %v1720
    %v1822 = vpack.c.b16 %v1723, %v1722
    %v1823 = vpack.c.b16 %v1725, %v1724
    %v1824 = vpack.c.b16 %v1727, %v1726
    %v1825 = vpack.c.b16 %v1729, %v1728
    %v1826 = vpack.c.b16 %v1731, %v1730
    %v1827 = vpack.c.b16 %v1733, %v1732
    %v1828 = vpack.c.b16 %v1735, %v1734
    %v1829 = vpack.c.b16 %v1737, %v1736
    %v1830 = vpack.c.b16 %v1739, %v1738
    %v1831 = vpack.c.b16 %v1741, %v1740
    %v1832 = vpack.c.b16 %v1743, %v1742
    %v1833 = vpack.c.b16 %v1745, %v1744
    %v1834 = vpack.c.b16 %v1747, %v1746
    %v1835 = vpack.c.b16 %v1749, %v1748
    %v1836 = vpack.c.b16 %v1751, %v1750
    %v1837 = vpack.c.b16 %v1753, %v1752
    %v1838 = vpack.c.b16 %v1755, %v1754
    %v1839 = vpack.c.b16 %v1757, %v1756
    %v1840 = vpack.c.b16 %v1759, %v1758
    %v1841 = vpack.c.b16 %v1761, %v1760
    %v1842 = vpack.c.b16 %v1763, %v1762
    %v1843 = vpack.c.b16 %v1765, %v1764
    %v1844 = vpack.c.b16 %v1767, %v1766
    %v1845 = vpack.c.b16 %v1769, %v1768
    %v1846 = vpack.c.b16 %v1771, %v1770
    %v1847 = vpack.c.b16 %v1773, %v1772
    %v1848 = vpack.c.b16 %v1775, %v1774
    %v1849 = vpack.c.b16 %v1777, %v1776
    %v1850 = vpack.c.b16 %v1779, %v1778
    %v1851 = vpack.c.b16 %v1781, %v1780
    %v1852 = vpack.c.b16 %v1783, %v1782
    %v1853 = vpack.c.b16 %v1785, %v1784
    %v1854 = vpack.c.b16 %v1787, %v1786
    %v1855 = vpack.c.b16 %v1789, %v1788
    %v1856 = vpack.c.b16 %v1791, %v1790
    %v1857 = vpack.c.b16 %v1793, %v1792
    %v1858 = vpack.c.b16 %v1795, %v1794
    %v1859 = vpack.c.b16 %v1797, %v1796
    %v1860 = vpack.c.b16 %v1799, %v1798
    %v1861 = vpack.c.b16 %v1801, %v1800
    %v1862 = vpack.c.b16 %v1803, %v1802
    %v1863 = vpack.c.b16 %v1805, %v1804
    %v1864 = vpack.c.b16 %v1807, %v1806
    %v1865 = vpack.c.b16 %v1809, %v1808
    %1922 = vmatprep.subr.bf16.mxu0 0
    %1923 = vmatpush1.bf16.msra.mxu0 %v1810
    %1924 = vmatprep.subr.bf16.mxu0 0
    %1925 = vmatpush1.bf16.msra.mxu0 %v1811
    %1926 = vmatprep.subr.bf16.mxu0 0
    %1927 = vmatpush1.bf16.msra.mxu0 %v1812
    %1928 = vmatprep.subr.bf16.mxu0 0
    %1929 = vmatpush1.bf16.msra.mxu0 %v1813
    %1930 = vmatprep.subr.bf16.mxu0 0
    %1931 = vmatpush1.bf16.msra.mxu0 %v1814
    %1932 = vmatprep.subr.bf16.mxu0 0
    %1933 = vmatpush1.bf16.msra.mxu0 %v1815
    %1934 = vmatprep.subr.bf16.mxu0 0
    %1935 = vmatpush1.bf16.msra.mxu0 %v1816
    %1936 = vmatprep.subr.bf16.mxu0 0
    %1937 = vmatpush1.bf16.msra.mxu0 %v1817
    %1938 = vmatprep.subr.bf16.mxu0 0
    %1939 = vmatpush1.bf16.msra.mxu0 %v1818
    %1940 = vmatprep.subr.bf16.mxu0 0
    %1941 = vmatpush1.bf16.msra.mxu0 %v1819
    %1942 = vmatprep.subr.bf16.mxu0 0
    %1943 = vmatpush1.bf16.msra.mxu0 %v1820
    %1944 = vmatprep.subr.bf16.mxu0 0
    %1945 = vmatpush1.bf16.msra.mxu0 %v1821
    %1946 = vmatprep.subr.bf16.mxu0 0
    %1947 = vmatpush1.bf16.msra.mxu0 %v1822
    %1948 = vmatprep.subr.bf16.mxu0 0
    %1949 = vmatpush1.bf16.msra.mxu0 %v1823
    %1950 = vmatprep.subr.bf16.mxu0 0
    %1951 = vmatpush1.bf16.msra.mxu0 %v1824
    %1952 = vmatprep.subr.bf16.mxu0 0
    %1953 = vmatpush1.bf16.msra.mxu0 %v1825
    %1954 = vmatprep.mubr.bf16.mxu0 %v1366
    %1955 = vmatmul.mubr.bf16.gmra.mrb[0].mxu0 %v1346
    %v1956 = vpop.f32.mrb[0].mxu0
    %v1957 = vadd.f32 %v1585, %v1956
    %v1958 = vpop.f32.mrb[0].mxu0
    %v1959 = vpop.f32.mrb[0].mxu0
    %v1960 = vadd.f32 %v1585, %v1959
    %v1961 = vpop.f32.mrb[0].mxu0
    %1962 = vmatprep.mubr.bf16.mxu0 %v1374
    %1963 = vmatmul.mubr.bf16.gmra.mrb[0].mxu0 %v1347
    %v1964 = vpop.f32.mrb[0].mxu0
    %v1965 = vadd.f32 %v1585, %v1964
    %v1966 = vpop.f32.mrb[0].mxu0
    %v1967 = vpop.f32.mrb[0].mxu0
    %v1968 = vadd.f32 %v1585, %v1967
    %v1969 = vpop.f32.mrb[0].mxu0
    %1970 = vmatprep.mubr.bf16.mxu0 %v1377
    %1971 = vmatmul.mubr.bf16.gmra.mrb[0].mxu0 %v1348
    %v1972 = vpop.f32.mrb[0].mxu0
    %v1973 = vadd.f32 %v1585, %v1972
    %v1974 = vpop.f32.mrb[0].mxu0
    %v1975 = vpop.f32.mrb[0].mxu0
    %v1976 = vadd.f32 %v1585, %v1975
    %v1977 = vpop.f32.mrb[0].mxu0
    %1978 = vdwg.mxu0
    %1979 = vmatprep.subr.bf16.mxu0 0
    %1980 = vmatpush1.bf16.msra.mxu0 %v1826
    %1981 = vmatprep.subr.bf16.mxu0 0
    %1982 = vmatpush1.bf16.msra.mxu0 %v1827
    %1983 = vmatprep.subr.bf16.mxu0 0
    %1984 = vmatpush1.bf16.msra.mxu0 %v1828
    %1985 = vmatprep.subr.bf16.mxu0 0
    %1986 = vmatpush1.bf16.msra.mxu0 %v1829
    %1987 = vmatprep.subr.bf16.mxu0 0
    %1988 = vmatpush1.bf16.msra.mxu0 %v1830
    %1989 = vmatprep.subr.bf16.mxu0 0
    %1990 = vmatpush1.bf16.msra.mxu0 %v1831
    %1991 = vmatprep.subr.bf16.mxu0 0
    %1992 = vmatpush1.bf16.msra.mxu0 %v1832
    %1993 = vmatprep.subr.bf16.mxu0 0
    %1994 = vmatpush1.bf16.msra.mxu0 %v1833
    %1995 = vmatprep.subr.bf16.mxu0 0
    %1996 = vmatpush1.bf16.msra.mxu0 %v1834
    %1997 = vmatprep.subr.bf16.mxu0 0
    %1998 = vmatpush1.bf16.msra.mxu0 %v1835
    %1999 = vmatprep.subr.bf16.mxu0 0
    %2000 = vmatpush1.bf16.msra.mxu0 %v1836
    %2001 = vmatprep.subr.bf16.mxu0 0
    %2002 = vmatpush1.bf16.msra.mxu0 %v1837
    %2003 = vmatprep.subr.bf16.mxu0 0
    %2004 = vmatpush1.bf16.msra.mxu0 %v1838
    %2005 = vmatprep.subr.bf16.mxu0 0
    %2006 = vmatpush1.bf16.msra.mxu0 %v1839
    %2007 = vmatprep.subr.bf16.mxu0 0
    %2008 = vmatpush1.bf16.msra.mxu0 %v1840
    %2009 = vmatprep.subr.bf16.mxu0 0
    %2010 = vmatpush1.bf16.msra.mxu0 %v1841
    %2011 = vmatprep.mubr.bf16.mxu0 %v1406
    %2012 = vmatmul.mubr.bf16.gmra.mrb[0].mxu0 %v1386
    %v2013 = vpop.f32.mrb[0].mxu0
    %v2014 = vadd.f32 %v1957, %v2013
    %v2015 = vpop.f32.mrb[0].mxu0
    %v2016 = vpop.f32.mrb[0].mxu0
    %v2017 = vadd.f32 %v1960, %v2016
    %v2018 = vpop.f32.mrb[0].mxu0
    %2019 = vmatprep.mubr.bf16.mxu0 %v1415
    %2020 = vmatmul.mubr.bf16.gmra.mrb[0].mxu0 %v1388
    %v2021 = vpop.f32.mrb[0].mxu0
    %v2022 = vadd.f32 %v1965, %v2021
    %v2023 = vpop.f32.mrb[0].mxu0
    %v2024 = vpop.f32.mrb[0].mxu0
    %v2025 = vadd.f32 %v1968, %v2024
    %v2026 = vpop.f32.mrb[0].mxu0
    %2027 = vmatprep.mubr.bf16.mxu0 %v1414
    %2028 = vmatmul.mubr.bf16.gmra.mrb[0].mxu0 %v1387
    %v2029 = vpop.f32.mrb[0].mxu0
    %v2030 = vadd.f32 %v1973, %v2029
    %v2031 = vpop.f32.mrb[0].mxu0
    %v2032 = vpop.f32.mrb[0].mxu0
    %v2033 = vadd.f32 %v1976, %v2032
    %v2034 = vpop.f32.mrb[0].mxu0
    %2035 = vdwg.mxu0
    %2036 = vmatprep.subr.bf16.mxu0 0
    %2037 = vmatpush1.bf16.msra.mxu0 %v1842
    %2038 = vmatprep.subr.bf16.mxu0 0
    %2039 = vmatpush1.bf16.msra.mxu0 %v1843
    %2040 = vmatprep.subr.bf16.mxu0 0
    %2041 = vmatpush1.bf16.msra.mxu0 %v1844
    %2042 = vmatprep.subr.bf16.mxu0 0
    %2043 = vmatpush1.bf16.msra.mxu0 %v1845
    %2044 = vmatprep.subr.bf16.mxu0 0
    %2045 = vmatpush1.bf16.msra.mxu0 %v1846
    %2046 = vmatprep.subr.bf16.mxu0 0
    %2047 = vmatpush1.bf16.msra.mxu0 %v1847
    %2048 = vmatprep.subr.bf16.mxu0 0
    %2049 = vmatpush1.bf16.msra.mxu0 %v1848
    %2050 = vmatprep.subr.bf16.mxu0 0
    %2051 = vmatpush1.bf16.msra.mxu0 %v1849
    %2052 = vmatprep.subr.bf16.mxu0 0
    %2053 = vmatpush1.bf16.msra.mxu0 %v1850
    %2054 = vmatprep.subr.bf16.mxu0 0
    %2055 = vmatpush1.bf16.msra.mxu0 %v1851
    %2056 = vmatprep.subr.bf16.mxu0 0
    %2057 = vmatpush1.bf16.msra.mxu0 %v1852
    %2058 = vmatprep.subr.bf16.mxu0 0
    %2059 = vmatpush1.bf16.msra.mxu0 %v1853
    %2060 = vmatprep.subr.bf16.mxu0 0
    %2061 = vmatpush1.bf16.msra.mxu0 %v1854
    %2062 = vmatprep.subr.bf16.mxu0 0
    %2063 = vmatpush1.bf16.msra.mxu0 %v1855
    %2064 = vmatprep.subr.bf16.mxu0 0
    %2065 = vmatpush1.bf16.msra.mxu0 %v1856
    %2066 = vmatprep.subr.bf16.mxu0 0
    %2067 = vmatpush1.bf16.msra.mxu0 %v1857
    %2068 = vmatprep.mubr.bf16.mxu0 %v1444
    %2069 = vmatmul.mubr.bf16.gmra.mrb[0].mxu0 %v1424
    %v2070 = vpop.f32.mrb[0].mxu0
    %v2071 = vadd.f32 %v2014, %v2070
    %v2072 = vpop.f32.mrb[0].mxu0
    %v2073 = vpop.f32.mrb[0].mxu0
    %v2074 = vadd.f32 %v2017, %v2073
    %v2075 = vpop.f32.mrb[0].mxu0
    %2076 = vmatprep.mubr.bf16.mxu0 %v1448
    %2077 = vmatmul.mubr.bf16.gmra.mrb[0].mxu0 %v1426
    %v2078 = vpop.f32.mrb[0].mxu0
    %v2079 = vadd.f32 %v2022, %v2078
    %v2080 = vpop.f32.mrb[0].mxu0
    %v2081 = vpop.f32.mrb[0].mxu0
    %v2082 = vadd.f32 %v2025, %v2081
    %v2083 = vpop.f32.mrb[0].mxu0
    %2084 = vmatprep.mubr.bf16.mxu0 %v1453
    %2085 = vmatmul.mubr.bf16.gmra.mrb[0].mxu0 %v1425
    %v2086 = vpop.f32.mrb[0].mxu0
    %v2087 = vadd.f32 %v2030, %v2086
    %v2088 = vpop.f32.mrb[0].mxu0
    %v2089 = vpop.f32.mrb[0].mxu0
    %v2090 = vadd.f32 %v2033, %v2089
    %v2091 = vpop.f32.mrb[0].mxu0
    %2092 = vdwg.mxu0
    %2093 = vmatprep.subr.bf16.mxu0 0
    %2094 = vmatpush1.bf16.msra.mxu0 %v1858
    %2095 = vmatprep.subr.bf16.mxu0 0
    %2096 = vmatpush1.bf16.msra.mxu0 %v1859
    %2097 = vmatprep.subr.bf16.mxu0 0
    %2098 = vmatpush1.bf16.msra.mxu0 %v1860
    %2099 = vmatprep.subr.bf16.mxu0 0
    %2100 = vmatpush1.bf16.msra.mxu0 %v1861
    %2101 = vmatprep.subr.bf16.mxu0 0
    %2102 = vmatpush1.bf16.msra.mxu0 %v1862
    %2103 = vmatprep.subr.bf16.mxu0 0
    %2104 = vmatpush1.bf16.msra.mxu0 %v1863
    %2105 = vmatprep.subr.bf16.mxu0 0
    %2106 = vmatpush1.bf16.msra.mxu0 %v1864
    %2107 = vmatprep.subr.bf16.mxu0 0
    %2108 = vmatpush1.bf16.msra.mxu0 %v1865
    %2109 = vmatprep.subr.bf16.mxu0 0
    %2110 = vmatpush1.bf16.msra.mxu0 0
    %2111 = vmatprep.subr.bf16.mxu0 0
    %2112 = vmatpush1.bf16.msra.mxu0 0
    %2113 = vmatprep.subr.bf16.mxu0 0
    %2114 = vmatpush1.bf16.msra.mxu0 0
    %2115 = vmatprep.subr.bf16.mxu0 0
    %2116 = vmatpush1.bf16.msra.mxu0 0
    %2117 = vmatprep.subr.bf16.mxu0 0
    %2118 = vmatpush1.bf16.msra.mxu0 0
    %2119 = vmatprep.subr.bf16.mxu0 0
    %2120 = vmatpush1.bf16.msra.mxu0 0
    %2121 = vmatprep.subr.bf16.mxu0 0
    %2122 = vmatpush1.bf16.msra.mxu0 0
    %2123 = vmatprep.subr.bf16.mxu0 0
    %2124 = vmatpush1.bf16.msra.mxu0 0
    %2125 = vmatprep.mubr.bf16.mxu0 0
    %2126 = vmatmul.mubr.bf16.gmra.mrb[0].mxu0 %v1462
    %v2127 = vpop.f32.mrb[0].mxu0
    %v2128 = vadd.f32 %v2071, %v2127
    %v2129 = vpop.f32.mrb[0].mxu0
    %v2130 = vpop.f32.mrb[0].mxu0
    %v2131 = vadd.f32 %v2074, %v2130
    %v2132 = vpop.f32.mrb[0].mxu0
    %2133 = vmatprep.mubr.bf16.mxu0 0
    %2134 = vmatmul.mubr.bf16.gmra.mrb[0].mxu0 %v1464
    %v2135 = vpop.f32.mrb[0].mxu0
    %v2136 = vadd.f32 %v2079, %v2135
    %v2137 = vpop.f32.mrb[0].mxu0
    %v2138 = vpop.f32.mrb[0].mxu0
    %v2139 = vadd.f32 %v2082, %v2138
    %v2140 = vpop.f32.mrb[0].mxu0
    %2141 = vmatprep.mubr.bf16.mxu0 0
    %2142 = vmatmul.mubr.bf16.gmra.mrb[0].mxu0 %v1466
    %v2143 = vpop.f32.mrb[0].mxu0
    %v2144 = vadd.f32 %v2087, %v2143
    %v2145 = vpop.f32.mrb[0].mxu0
    %v2146 = vpop.f32.mrb[0].mxu0
    %v2147 = vadd.f32 %v2090, %v2146
    %v2148 = vpop.f32.mrb[0].mxu0
    %2149 = vdwg.mxu0
    %v2150 = vsel %vm178, %v2128, 0.0
    %v2151 = vsel %vm179, %v2131, 0.0
    %v2152 = vsel %vm180, %v2136, 0.0
    %v2153 = vsel %vm181, %v2139, 0.0
    %v2154 = vsel %vm182, %v2144, 0.0
    %v2155 = vsel %vm183, %v2147, 0.0
    %v2156 = vadd.f32 %v2150, %v2151
    %v2157 = vadd.f32 %v2156, %v2152
    %v2158 = vadd.f32 %v2157, %v2153
    %v2159 = vadd.f32 %v2158, %v2154
    %v2160 = vsel %vm1135, %v2155, 0.0
    %v2161 = vadd.f32 %v2159, %v2160
    %v2162 = vrot.slane %v2161, 4
    %v2163 = vadd.f32 %v2161, %v2162
    %v2164 = vrot.slane %v2163, 2
    %v2165 = vadd.f32 %v2163, %v2164
    %v2166 = vrot.slane %v2165, 1
    %v2167 = vadd.f32 %v2165, %v2166
    %v2168 = vmul.f32 %v2167, 0.03125
    %v2169 = vsub.f32 %v2128, %v2168
    %v2170 = vsub.f32 %v2131, %v2168
    %v2171 = vsub.f32 %v2136, %v2168
    %v2172 = vsub.f32 %v2139, %v2168
    %v2173 = vsub.f32 %v2144, %v2168
    %v2174 = vsub.f32 %v2147, %v2168
    %v2175 = vsel %vm178, %v2169, 0.0
    %v2176 = vsel %vm179, %v2170, 0.0
    %v2177 = vsel %vm180, %v2171, 0.0
    %v2178 = vsel %vm181, %v2172, 0.0
    %v2179 = vsel %vm182, %v2173, 0.0
    %v2180 = vsel %vm183, %v2174, 0.0
    %v2181 = vmul.f32 %v2175, %v2175
    %v2182 = vmul.f32 %v2176, %v2176
    %v2183 = vmul.f32 %v2177, %v2177
    %v2184 = vmul.f32 %v2178, %v2178
    %v2185 = vmul.f32 %v2179, %v2179
    %v2186 = vmul.f32 %v2180, %v2180
    %v2187 = vadd.f32 %v2181, %v2182
    %v2188 = vadd.f32 %v2187, %v2183
    %v2189 = vadd.f32 %v2188, %v2184
    %v2190 = vadd.f32 %v2189, %v2185
    %v2191 = vsel %vm1135, %v2186, 0.0
    %v2192 = vadd.f32 %v2190, %v2191
    %v2193 = vrot.slane %v2192, 4
    %v2194 = vadd.f32 %v2192, %v2193
    %v2195 = vrot.slane %v2194, 2
    %v2196 = vadd.f32 %v2194, %v2195
    %v2197 = vrot.slane %v2196, 1
    %v2198 = vadd.f32 %v2196, %v2197
    %v2199 = vmul.f32 %v2198, 0.03125
    %v2200 = vadd.f32 %v2199, 1e-05
    %v2201 = vrsqrt.pop %v2200
    %v2202 = vmul.f32 %v188, %v2201
    %v2203 = vlaneseq
    %v2204 = vshrl.u32 %v2203, 7
    %v2205 = vsub.s32 0, %v2204
    %v2206 = vrot.slane %v2202, %v2205
    %v2207 = vmul.f32 %v2169, %v2206
    %v2208 = vmul.f32 %v2170, %v2206
    %v2209 = vmul.f32 %v2171, %v2206
    %v2210 = vmul.f32 %v2172, %v2206
    %v2211 = vmul.f32 %v2173, %v2206
    %v2212 = vmul.f32 %v2174, %v2206
    %v2213 = vlaneseq
    %v2214 = vshrl.u32 %v2213, 7
    %v2215 = vsub.s32 0, %v2214
    %v2216 = vrot.slane %v189, %v2215
    %v2217 = vadd.f32 %v2207, %v2216
    %v2218 = vadd.f32 %v2208, %v2216
    %v2219 = vadd.f32 %v2209, %v2216
    %v2220 = vadd.f32 %v2210, %v2216
    %v2221 = vadd.f32 %v2211, %v2216
    %v2222 = vadd.f32 %v2212, %v2216
    %vm2223 = vcmp.ge.f32.partialorder %v2217, 0.0
    %vm2224 = vcmp.ge.f32.partialorder %v2218, 0.0
    %vm2225 = vcmp.ge.f32.partialorder %v2219, 0.0
    %vm2226 = vcmp.ge.f32.partialorder %v2220, 0.0
    %vm2227 = vcmp.ge.f32.partialorder %v2221, 0.0
    %vm2228 = vcmp.ge.f32.partialorder %v2222, 0.0
    %v2229 = vmul.f32 %v2217, 0.2
    %v2230 = vmul.f32 %v2218, 0.2
    %v2231 = vmul.f32 %v2219, 0.2
    %v2232 = vmul.f32 %v2220, 0.2
    %v2233 = vmul.f32 %v2221, 0.2
    %v2234 = vmul.f32 %v2222, 0.2
    %v2235 = vsel %vm2223, %v2217, %v2229
    %v2236 = vsel %vm2224, %v2218, %v2230
    %v2237 = vsel %vm2225, %v2219, %v2231
    %v2238 = vsel %vm2226, %v2220, %v2232
    %v2239 = vsel %vm2227, %v2221, %v2233
    %v2240 = vsel %vm2228, %v2222, %v2234
    %v2241 = vsel %vm178, %v2235, -inf
    %v2242 = vsel %vm179, %v2236, -inf
    %v2243 = vsel %vm180, %v2237, -inf
    %v2244 = vsel %vm181, %v2238, -inf
    %v2245 = vsel %vm182, %v2239, -inf
    %v2246 = vsel %vm183, %v2240, -inf
    %2247 = vst [vmem:[#allocation10] sm:$0xff] %v2241
    %2248 = vst [vmem:[#allocation10 + $0x8] sm:$0xff] %v2242
    %2249 = vst [vmem:[#allocation10 + $0x10] sm:$0xff] %v2243
    %2250 = vst [vmem:[#allocation10 + $0x18] sm:$0xff] %v2244
    %2251 = vst [vmem:[#allocation10 + $0x20] sm:$0xff] %v2245
    %2252 = vst [vmem:[#allocation10 + $0x28] sm:$0xf] %v2246
    %2253 = vst [vmem:[#allocation10 + $0x2c] sm:$0xff] -inf
    %s2254 = scalar_lea.vmem [#allocation10], 1
    %v2255 = vld [vmem:[%s2254] ss:$2 sm:$0xff]
    %s2256 = scalar_lea.vmem [#allocation10], 17
    %v2257 = vld [vmem:[%s2256] ss:$2 sm:$0xff]
    %s2258 = scalar_lea.vmem [#allocation10], 33
    %v2259 = vld [vmem:[%s2258] ss:$2 sm:$0x3f]
    %s2260 = scalar_lea.vmem [#allocation10], 2
    %v2261 = vld [vmem:[%s2260] ss:$2 sm:$0xff]
    %s2262 = scalar_lea.vmem [#allocation10], 18
    %v2263 = vld [vmem:[%s2262] ss:$2 sm:$0xff]
    %s2264 = scalar_lea.vmem [#allocation10], 34
    %v2265 = vld [vmem:[%s2264] ss:$2 sm:$0x3f]
    %v2266 = vmax.f32 %v2255, %v2261
    %v2267 = vmax.f32 %v2257, %v2263
    %v2268 = vmax.f32 %v2259, %v2265
    %s2269 = scalar_lea.vmem [#allocation10], 3
    %v2270 = vld [vmem:[%s2269] ss:$2 sm:$0xff]
    %s2271 = scalar_lea.vmem [#allocation10], 19
    %v2272 = vld [vmem:[%s2271] ss:$2 sm:$0xff]
    %s2273 = scalar_lea.vmem [#allocation10], 35
    %v2274 = vld [vmem:[%s2273] ss:$2 sm:$0x3f]
    %v2275 = vmax.f32 %v2266, %v2270
    %v2276 = vmax.f32 %v2267, %v2272
    %v2277 = vmax.f32 %v2268, %v2274
    %s2278 = scalar_lea.vmem [#allocation10], 4
    %v2279 = vld [vmem:[%s2278] ss:$2 sm:$0xff]
    %s2280 = scalar_lea.vmem [#allocation10], 20
    %v2281 = vld [vmem:[%s2280] ss:$2 sm:$0xff]
    %s2282 = scalar_lea.vmem [#allocation10], 36
    %v2283 = vld [vmem:[%s2282] ss:$2 sm:$0x3f]
    %v2284 = vmax.f32 %v2275, %v2279
    %v2285 = vmax.f32 %v2276, %v2281
    %v2286 = vmax.f32 %v2277, %v2283
    %s2287 = scalar_lea.vmem [#allocation10], 5
    %v2288 = vld [vmem:[%s2287] ss:$2 sm:$0xff]
    %s2289 = scalar_lea.vmem [#allocation10], 21
    %v2290 = vld [vmem:[%s2289] ss:$2 sm:$0xff]
    %s2291 = scalar_lea.vmem [#allocation10], 37
    %v2292 = vld [vmem:[%s2291] ss:$2 sm:$0x3f]
    %v2293 = vmax.f32 %v2284, %v2288
    %v2294 = vmax.f32 %v2285, %v2290
    %v2295 = vmax.f32 %v2286, %v2292
    %2296 = vst [vmem:[#allocation11] sm:$0xff] %v2293
    %2297 = vst [vmem:[#allocation11 + $0x8] sm:$0xff] %v2294
    %2298 = vst [vmem:[#allocation11 + $0x10] sm:$0x3f] %v2295
    // Predicated region
    $region30: #{tpu_custom_call.1} parent=1 // pred_check
      _
    $region31: #{tpu_custom_call.1} parent=1 // pred_check_branch
      %2300 = sbr.rel (0) target = $region33
    $region32: #{tpu_custom_call.1} parent=1 // pred_region
      %s2302 = ssub.s32 896, 896
      %2303 = vsyncadd [#allocation6], %s2302
      %s2304 = sshll.u32 [#allocation10], 4
      %s2305 = int_to_ptr.vmem [resolvable:$true] %s2304
      %2310 = dma.vmem_to_hbm [thread:$0]  %s2305, 896, %s4, [#allocation6], 128, 128, 8
    $region33: #{tpu_custom_call.1} parent=1 // pred_fallthru
      _
    // Predicated region
    $region34: #{tpu_custom_call.1} parent=1 // pred_check
      _
    $region35: #{tpu_custom_call.1} parent=1 // pred_check_branch
      %2312 = sbr.rel (0) target = $region37
    $region36: #{tpu_custom_call.1} parent=1 // pred_region
      %s2314 = ssub.s32 384, 384
      %2315 = vsyncadd [#allocation12], %s2314
      %s2316 = sshll.u32 [#allocation11], 4
      %s2317 = int_to_ptr.vmem [resolvable:$true] %s2316
      %2322 = dma.vmem_to_hbm [thread:$0]  %s2317, 384, %s5, [#allocation12], 128, 128, 8
    $region37: #{tpu_custom_call.1} parent=1 // pred_fallthru
      _
    // Predicated region
    $region38: #{tpu_custom_call.1} parent=1 // pred_check
      _
    $region39: #{tpu_custom_call.1} parent=1 // pred_check_branch
      %2324 = sbr.rel (0) target = $region41
    $region40: #{tpu_custom_call.1} parent=1 // pred_region
      %2325 = dma.done [#allocation6], 896
    $region41: #{tpu_custom_call.1} parent=1 // pred_fallthru
      _
    // Predicated region
    $region42: #{tpu_custom_call.1} parent=1 // pred_check
      _
    $region43: #{tpu_custom_call.1} parent=1 // pred_check_branch
      %2327 = sbr.rel (0) target = $region45
    $region44: #{tpu_custom_call.1} parent=1 // pred_region
      %2328 = dma.done [#allocation12], 384
    $region45: #{tpu_custom_call.1} parent=1 // pred_fallthru
      _
    %2329 = vsyncpa [#allocation5], 1
    %2330 = vsyncpa [#allocation8], 1
    %2331 = vsyncpa [#allocation6], 1
    %2332 = vsyncpa [#allocation12], 1

</llo_original>
